<compile_context>
chip_gen: v7x
topology: tpu7x:2x2x1
jax: 0.10.0
libtpu: 0.0.40
codegen_flags: <defaults>
</compile_context>

<pallas_src>
import functools
import math

import jax
import jax.numpy as jnp
from jax.experimental import pallas as pl
from jax.experimental.pallas import tpu as pltpu


def _layernorm(x, gamma, beta, eps=1e-5):
    # x: (rows, D) f32, gamma/beta: (1, D) f32
    mu = jnp.mean(x, axis=-1, keepdims=True)
    var = jnp.mean((x - mu) ** 2, axis=-1, keepdims=True)
    inv = jax.lax.rsqrt(var + eps)
    return (x - mu) * inv * gamma + beta


def encoder_layer_kernel(
    x_ref,                      # (1, S, D)  bf16  full sequence of this batch element
    wqkv_ref, bqkv_ref,         # (D, 3D) bf16, (1, 3D) f32   fused Q|K|V projection
    woh_ref, bo_ref,            # (H, dk, D) bf16, (1, D) f32 output projection (head-major)
    ln1_g_ref, ln1_b_ref,       # (1, D) f32
    w1_ref, b1_ref,             # (D, d_ff) bf16, (1, d_ff) f32
    w2_ref, b2_ref,             # (d_ff, D) bf16, (1, D) f32
    ln2_g_ref, ln2_b_ref,       # (1, D) f32
    out_ref,                    # (1, tq, D) f32
    q_scr,                      # (H, S, dk) bf16 scratch, Q pre-scaled by 1/sqrt(dk)
    kt_scr,                     # (H, dk, S) bf16 scratch, K pre-transposed
    v_scr,                      # (H, S, dk) bf16 scratch
    *, num_heads: int, head_chunk: int, qkv_rows: int,
):
    i = pl.program_id(1)                       # query-tile index (innermost, "arbitrary")
    S, D = x_ref.shape[1], x_ref.shape[2]
    tq = out_ref.shape[1]
    H = num_heads
    dk = D // H
    scale = 1.0 / math.sqrt(dk)
    n_chunks = S // qkv_rows

    # ---- once per batch element: fused QKV projection, cached head-major ----
    # Row-chunked (static unroll, <= 4 chunks) so the f32 (rows, 3D) temp stays small.
    @pl.when(i == 0)
    def _():
        for c in range(n_chunks):              # static; executed once per batch element
            r0 = c * qkv_rows
            x_blk = x_ref[0, r0:r0 + qkv_rows, :]                         # (rows, D) bf16
            qkv = jnp.dot(x_blk, wqkv_ref[...],
                          preferred_element_type=jnp.float32) + bqkv_ref[...]
            for h in range(H):                  # static scatter into head-major scratch
                q_blk = qkv[:, h * dk:(h + 1) * dk] * scale               # pre-scaled Q
                k_blk = qkv[:, (H + h) * dk:(H + h + 1) * dk]
                v_blk = qkv[:, (2 * H + h) * dk:(2 * H + h + 1) * dk]
                q_scr[h, r0:r0 + qkv_rows, :] = q_blk.astype(jnp.bfloat16)
                # K pre-transposed once here (XLU work outside the per-tile hot path).
                kt_scr[h, :, r0:r0 + qkv_rows] = k_blk.astype(jnp.bfloat16).T
                v_scr[h, r0:r0 + qkv_rows, :] = v_blk.astype(jnp.bfloat16)

    row0 = pl.multiple_of(i * tq, tq)
    x_t = x_ref[0, pl.ds(row0, tq), :].astype(jnp.float32)                # (tq, D) residual

    # ---- head-chunked attention for this query tile ----
    attn_out = jnp.zeros((tq, D), jnp.float32)
    for h0 in range(0, H, head_chunk):          # static; bounds live (hc, tq, S) block
        hc = head_chunk
        q_h = q_scr[h0:h0 + hc, pl.ds(row0, tq), :]                       # (hc, tq, dk) bf16
        kt_h = kt_scr[h0:h0 + hc]                                         # (hc, dk, S)  bf16
        v_h = v_scr[h0:h0 + hc]                                           # (hc, S, dk)  bf16

        # Q already carries 1/sqrt(dk); K already transposed -> plain batched matmul.
        s = jnp.einsum("hqd,hdk->hqk", q_h, kt_h,
                       preferred_element_type=jnp.float32)                # (hc, tq, S) f32
        s = s - jnp.max(s, axis=-1, keepdims=True)
        p = jnp.exp(s)                                                    # un-normalized
        denom = jnp.sum(p, axis=-1, keepdims=True)                        # (hc, tq, 1)
        o_h = jnp.einsum("hqk,hkd->hqd", p.astype(jnp.bfloat16), v_h,
                         preferred_element_type=jnp.float32)              # (hc, tq, dk) f32
        # Normalize after the PV matmul: dk-wide multiply, exact reciprocal.
        o_h = o_h * pl.reciprocal(denom, approx=False)

        # Accumulating per-head output projection: no (H, tq, D) intermediate.
        for h in range(hc):
            attn_out = attn_out + jnp.dot(
                o_h[h].astype(jnp.bfloat16), woh_ref[h0 + h],
                preferred_element_type=jnp.float32)

    # ---- residual + LayerNorm 1 ----
    resid_mid = _layernorm(x_t + attn_out + bo_ref[...], ln1_g_ref[...], ln1_b_ref[...])

    # ---- position-wise feed-forward ----
    h1 = jnp.dot(resid_mid.astype(jnp.bfloat16), w1_ref[...],
                 preferred_element_type=jnp.float32) + b1_ref[...]
    h1 = jnp.maximum(h1, 0.0)
    ff = jnp.dot(h1.astype(jnp.bfloat16), w2_ref[...],
                 preferred_element_type=jnp.float32) + b2_ref[...]

    # ---- residual + LayerNorm 2 ----
    out_ref[0] = _layernorm(resid_mid + ff, ln2_g_ref[...], ln2_b_ref[...])


# ------------------------------ tiling / VMEM policy ------------------------------

def _divisor_tiles(S, cap=512):
    """Query-tile candidates: divisors of S, multiples of 8 (or == S), descending."""
    cands = [d for d in range(min(S, cap), 0, -1)
             if S % d == 0 and (d % 8 == 0 or d == S)]
    return cands if cands else [S]


def _choose_qkv_rows(S):
    """Row chunk for the i==0 QKV projection: <= 4 static chunks, lane-aligned."""
    if S <= 512 or S % 128 != 0:
        return S
    cands = [r for r in range(128, S, 128) if S % r == 0 and r * 4 >= S]
    return min(cands) if cands else S


def _vmem_bytes_estimate(S, D, d_ff, H, tq, hc, qkv_rows, weight_bufs=1):
    dk = D // H
    bf16, f32 = 2, 4
    weights = (D * 3 * D + H * dk * D + D * d_ff + d_ff * D) * bf16 * weight_bufs
    small = (3 * D + D + d_ff + 5 * D) * f32 * weight_bufs
    x_io = 2 * S * D * bf16 + 2 * tq * D * f32          # bf16 x + f32 out (double-buffered)
    scratch = 3 * H * S * dk * bf16                      # cached Q / K^T / V
    qkv_tmp = qkv_rows * 3 * D * f32 + qkv_rows * D * bf16
    attn_work = hc * tq * S * (f32 + f32 + bf16) + hc * tq * dk * f32 + tq * D * f32
    ffn_work = tq * d_ff * (f32 + bf16) + 6 * tq * D * f32
    return weights + small + x_io + scratch + max(qkv_tmp, attn_work) + ffn_work


def _choose_tiles(S, D, d_ff, H, budget, qkv_rows):
    """Largest (tq, head_chunk) whose working set fits the VMEM budget.

    Prefers large tq (fewer grid steps, better MXU M-dim) and, within a tq, the
    largest head chunk.  v6e/v5e (128 MiB) typically get tq up to 512; v7x
    (64 MiB) gets a smaller tq and/or head chunk.
    """
    hcs = [h for h in range(H, 0, -1) if H % h == 0]
    tqs = _divisor_tiles(S)
    for tq in tqs:
        for hc in hcs:
            if _vmem_bytes_estimate(S, D, d_ff, H, tq, hc, qkv_rows) <= budget:
                return tq, hc
    return tqs[-1], 1   # best effort; working set exceeds budget for this shape


# ------------------------------ pallas_call builder ------------------------------

def _const_spec(shape, single_buffer):
    zero = (0,) * len(shape)
    index_map = lambda b, i, _z=zero: _z
    if single_buffer:
        # Constant blocks never change across the grid -> a single VMEM buffer is
        # enough (halves weight residency; important on v7x's 64 MiB VMEM).
        return pl.BlockSpec(shape, index_map, pipeline_mode=pl.Buffered(1))
    return pl.BlockSpec(shape, index_map)


def _build_encoder_call(B, S, D, d_ff, H, tq, hc, qkv_rows, vmem_limit,
                        single_buffer_weights):
    dk = D // H
    wspec = functools.partial(_const_spec, single_buffer=single_buffer_weights)

    in_specs = [
        pl.BlockSpec((1, S, D), lambda b, i: (b, 0, 0)),        # x (full seq, bf16)
        wspec((D, 3 * D)), wspec((1, 3 * D)),                   # fused W_QKV, b_QKV
        wspec((H, dk, D)), wspec((1, D)),                       # W_out (head-major), b_out
        wspec((1, D)), wspec((1, D)),                           # LN1 gamma, beta
        wspec((D, d_ff)), wspec((1, d_ff)),                     # W_1, b_1
        wspec((d_ff, D)), wspec((1, D)),                        # W_2, b_2
        wspec((1, D)), wspec((1, D)),                           # LN2 gamma, beta
    ]

    kernel = functools.partial(encoder_layer_kernel, num_heads=H,
                               head_chunk=hc, qkv_rows=qkv_rows)
    return pl.pallas_call(
        kernel,
        out_shape=jax.ShapeDtypeStruct((B, S, D), jnp.float32),
        grid_spec=pltpu.PrefetchScalarGridSpec(
            num_scalar_prefetch=0,
            grid=(B, S // tq),
            in_specs=in_specs,
            out_specs=pl.BlockSpec((1, tq, D), lambda b, i: (b, i, 0)),
            scratch_shapes=[
                pltpu.VMEM((H, S, dk), jnp.bfloat16),    # Q (pre-scaled)
                pltpu.VMEM((H, dk, S), jnp.bfloat16),    # K^T (pre-transposed)
                pltpu.VMEM((H, S, dk), jnp.bfloat16),    # V
            ],
        ),
        compiler_params=pltpu.CompilerParams(
            # batch axis -> megacore-parallel; query-tile axis carries the cached
            # Q/K^T/V scratch, so it must stay "arbitrary" within a batch element.
            dimension_semantics=("parallel", "arbitrary"),
            vmem_limit_bytes=vmem_limit,
        ),
    )


# ------------------------------ public API ------------------------------

def prepare_encoder_params(params, num_heads):
    """One-time weight prep (hoisted out of the per-forward-call path)."""
    D = params["wq"].shape[0]
    dk = D // num_heads
    bf16, f32 = jnp.bfloat16, jnp.float32
    return {
        "wqkv": jnp.concatenate([params["wq"], params["wk"], params["wv"]],
                                axis=1).astype(bf16),
        "bqkv": jnp.concatenate([params["bq"], params["bk"], params["bv"]],
                                axis=1).astype(f32),
        "woh": params["wo"].reshape(num_heads, dk, D).astype(bf16),
        "bo": params["bo"].astype(f32),
        "ln1_g": params["ln1_g"].astype(f32), "ln1_b": params["ln1_b"].astype(f32),
        "w1": params["w1"].astype(bf16), "b1": params["b1"].astype(f32),
        "w2": params["w2"].astype(bf16), "b2": params["b2"].astype(f32),
        "ln2_g": params["ln2_g"].astype(f32), "ln2_b": params["ln2_b"].astype(f32),
    }


def transformer_encoder_layer(x, prepared, num_heads, *, tq=None, head_chunk=None):
    B, S, D = x.shape
    assert D % num_heads == 0, "d_model must be divisible by num_heads"
    d_ff = prepared["w1"].shape[1]

    qkv_rows = _choose_qkv_rows(S)
    try:
        vmem_cap = int(pltpu.get_tpu_info().vmem_capacity_bytes)
    except Exception:  # noqa: BLE001 - capability probe only; conservative default (v7x)
        vmem_cap = 64 * 1024 * 1024
    # Leave ~16 MiB of headroom for Mosaic internal scratch / spill.
    budget = max(vmem_cap - 16 * 1024 * 1024, vmem_cap // 2)

    auto_tq, auto_hc = _choose_tiles(S, D, d_ff, num_heads, budget, qkv_rows)
    tq = auto_tq if tq is None else tq
    hc = auto_hc if head_chunk is None else head_chunk
    assert S % tq == 0, "query tile must divide sequence length"
    assert num_heads % hc == 0, "head chunk must divide num_heads"

    est = _vmem_bytes_estimate(S, D, d_ff, num_heads, tq, hc, qkv_rows, weight_bufs=1)
    vmem_limit = int(min(max(est * 5 // 4, 32 * 1024 * 1024), budget))

    operands = (
        x.astype(jnp.bfloat16),                      # bf16 x: halves DMA + VMEM residency
        prepared["wqkv"], prepared["bqkv"],
        prepared["woh"], prepared["bo"],
        prepared["ln1_g"], prepared["ln1_b"],
        prepared["w1"], prepared["b1"],
        prepared["w2"], prepared["b2"],
        prepared["ln2_g"], prepared["ln2_b"],
    )

    single_buffer = hasattr(pl, "Buffered")
    if single_buffer:
        try:
            call = _build_encoder_call(B, S, D, d_ff, num_heads, tq, hc, qkv_rows,
                                       vmem_limit, True)
            return call(*operands)
        except Exception as e:  # narrow fallback: only pipeline_mode / Buffered issues
            msg = f"{type(e).__name__}: {e}".lower()
            if not ("buffer" in msg or "pipeline" in msg):
                raise
    # Default double-buffered weights: re-derive the VMEM limit for the larger footprint.
    est2 = _vmem_bytes_estimate(S, D, d_ff, num_heads, tq, hc, qkv_rows, weight_bufs=2)
    vmem_limit2 = int(min(max(est2 * 5 // 4, 32 * 1024 * 1024), budget))
    call = _build_encoder_call(B, S, D, d_ff, num_heads, tq, hc, qkv_rows,
                               vmem_limit2, False)
    return call(*operands)


# ------------------------------ pure-JAX reference ------------------------------

def reference_encoder_layer(x, params, num_heads):
    """Pure-JAX f32 reference mirroring the PyTorch forward (dropout = identity)."""
    B, S, D = x.shape
    d_k = D // num_heads

    def lin(a, w, b):
        return a @ w + b[0]

    q = lin(x, params["wq"], params["bq"]).reshape(B, S, num_heads, d_k).transpose(0, 2, 1, 3)
    k = lin(x, params["wk"], params["bk"]).reshape(B, S, num_heads, d_k).transpose(0, 2, 1, 3)
    v = lin(x, params["wv"], params["bv"]).reshape(B, S, num_heads, d_k).transpose(0, 2, 1, 3)
    scores = jnp.einsum("bhqd,bhkd->bhqk", q, k) / math.sqrt(d_k)
    p = jax.nn.softmax(scores, axis=-1)
    attn = jnp.einsum("bhqk,bhkd->bhqd", p, v).transpose(0, 2, 1, 3).reshape(B, S, D)
    attn_out = lin(attn, params["wo"], params["bo"])

    def ln(a, g, b, eps=1e-5):
        mu = a.mean(-1, keepdims=True)
        var = ((a - mu) ** 2).mean(-1, keepdims=True)
        return (a - mu) / jnp.sqrt(var + eps) * g[0] + b[0]

    resid_mid = ln(x + attn_out, params["ln1_g"], params["ln1_b"])
    h1 = jnp.maximum(lin(resid_mid, params["w1"], params["b1"]), 0.0)
    ff = lin(h1, params["w2"], params["b2"])
    return ln(resid_mid + ff, params["ln2_g"], params["ln2_b"])


if __name__ == "__main__":
    # Small shapes consistent with the module.
    B, S, D, H, D_FF = 2, 8, 32, 4, 64

    key = jax.random.PRNGKey(0)
    ks = jax.random.split(key, 12)

    def nrm(k, shape, scale=0.02):
        return (scale * jax.random.normal(k, shape)).astype(jnp.float32)

    params = {
        "wq": nrm(ks[0], (D, D)),   "bq": nrm(ks[1], (1, D)),
        "wk": nrm(ks[2], (D, D)),   "bk": nrm(ks[3], (1, D)),
        "wv": nrm(ks[4], (D, D)),   "bv": nrm(ks[5], (1, D)),
        "wo": nrm(ks[6], (D, D)),   "bo": nrm(ks[7], (1, D)),
        "ln1_g": jnp.ones((1, D), jnp.float32), "ln1_b": jnp.zeros((1, D), jnp.float32),
        "w1": nrm(ks[8], (D, D_FF)), "b1": nrm(ks[9], (1, D_FF)),
        "w2": nrm(ks[10], (D_FF, D)), "b2": nrm(ks[11], (1, D)),
        "ln2_g": jnp.ones((1, D), jnp.float32), "ln2_b": jnp.zeros((1, D), jnp.float32),
    }

    x = jax.random.normal(jax.random.PRNGKey(42), (B, S, D), dtype=jnp.float32)

    prepared = prepare_encoder_params(params, H)   # one-time weight prep
    out = transformer_encoder_layer(x, prepared, H)
    out = jax.block_until_ready(out)

    ref = reference_encoder_layer(x, params, H)
    assert out.shape == (B, S, D)
    max_err = float(jnp.max(jnp.abs(out - ref)))
    # bf16 matmul inputs (f32 accumulation) and a bf16 residual copy of x -> slightly
    # looser tolerance than a pure-f32 kernel (softmax reciprocal is now exact).
    assert jnp.allclose(out, ref, atol=2.5e-2, rtol=2.5e-2), (
        f"mismatch vs JAX reference (max abs err={max_err:.3e})"
    )
    print("KERNEL_OK")
</pallas_src>

<mosaic_0001>
module attributes {stable_mosaic.version = 11 : i64} {
  func.func @encoder_layer_kernel(%arg0: i32, %arg1: i32, %arg2: memref<1x8x32xbf16, #tpu.memory_space<vmem>>, %arg3: memref<32x96xbf16, #tpu.memory_space<vmem>>, %arg4: memref<1x96xf32, #tpu.memory_space<vmem>>, %arg5: memref<4x8x32xbf16, #tpu.memory_space<vmem>>, %arg6: memref<1x32xf32, #tpu.memory_space<vmem>>, %arg7: memref<1x32xf32, #tpu.memory_space<vmem>>, %arg8: memref<1x32xf32, #tpu.memory_space<vmem>>, %arg9: memref<32x64xbf16, #tpu.memory_space<vmem>>, %arg10: memref<1x64xf32, #tpu.memory_space<vmem>>, %arg11: memref<64x32xbf16, #tpu.memory_space<vmem>>, %arg12: memref<1x32xf32, #tpu.memory_space<vmem>>, %arg13: memref<1x32xf32, #tpu.memory_space<vmem>>, %arg14: memref<1x32xf32, #tpu.memory_space<vmem>>, %arg15: memref<1x8x32xf32, #tpu.memory_space<vmem>>, %arg16: memref<4x8x8xbf16, #tpu.memory_space<vmem>>, %arg17: memref<4x8x8xbf16, #tpu.memory_space<vmem>>, %arg18: memref<4x8x8xbf16, #tpu.memory_space<vmem>>) attributes {dimension_semantics = [#tpu.dimension_semantics<parallel>, #tpu.dimension_semantics<arbitrary>], iteration_bounds = array<i64: 2, 1>, scalar_prefetch = 0 : i64, scratch_operands = 3 : i64, tpu.core_type = #tpu.core_type<tc>, window_params = [{transform_indices = @transform_0, window_bounds = array<i64: 1, 8, 32>}, {pipeline_mode = #tpu.pipeline_mode<synchronous>, transform_indices = @transform_1, window_bounds = array<i64: 32, 96>}, {pipeline_mode = #tpu.pipeline_mode<synchronous>, transform_indices = @transform_2, window_bounds = array<i64: 1, 96>}, {pipeline_mode = #tpu.pipeline_mode<synchronous>, transform_indices = @transform_3, window_bounds = array<i64: 4, 8, 32>}, {pipeline_mode = #tpu.pipeline_mode<synchronous>, transform_indices = @transform_4, window_bounds = array<i64: 1, 32>}, {pipeline_mode = #tpu.pipeline_mode<synchronous>, transform_indices = @transform_5, window_bounds = array<i64: 1, 32>}, {pipeline_mode = #tpu.pipeline_mode<synchronous>, transform_indices = @transform_6, window_bounds = array<i64: 1, 32>}, {pipeline_mode = #tpu.pipeline_mode<synchronous>, transform_indices = @transform_7, window_bounds = array<i64: 32, 64>}, {pipeline_mode = #tpu.pipeline_mode<synchronous>, transform_indices = @transform_8, window_bounds = array<i64: 1, 64>}, {pipeline_mode = #tpu.pipeline_mode<synchronous>, transform_indices = @transform_9, window_bounds = array<i64: 64, 32>}, {pipeline_mode = #tpu.pipeline_mode<synchronous>, transform_indices = @transform_10, window_bounds = array<i64: 1, 32>}, {pipeline_mode = #tpu.pipeline_mode<synchronous>, transform_indices = @transform_11, window_bounds = array<i64: 1, 32>}, {pipeline_mode = #tpu.pipeline_mode<synchronous>, transform_indices = @transform_12, window_bounds = array<i64: 1, 32>}, {transform_indices = @transform_13, window_bounds = array<i64: 1, 8, 32>}]} {
    %c0_i32 = arith.constant 0 : i32
    %0 = arith.cmpi eq, %arg1, %c0_i32 : i32
    %1 = arith.extui %0 : i1 to i32
    %c0_i32_0 = arith.constant 0 : i32
    %2 = arith.cmpi ne, %1, %c0_i32_0 : i32
    scf.if %2 {
      %c0_61 = arith.constant 0 : index
      %c0_62 = arith.constant 0 : index
      %c0_63 = arith.constant 0 : index
      %125 = vector.load %arg2[%c0_61, %c0_62, %c0_63] : memref<1x8x32xbf16, #tpu.memory_space<vmem>>, vector<1x8x32xbf16>
      %126 = vector.shape_cast %125 : vector<1x8x32xbf16> to vector<8x32xbf16>
      %c0_64 = arith.constant 0 : index
      %c0_65 = arith.constant 0 : index
      %127 = vector.load %arg3[%c0_64, %c0_65] : memref<32x96xbf16, #tpu.memory_space<vmem>>, vector<32x96xbf16>
      %cst_66 = arith.constant dense<0.000000e+00> : vector<8x96xf32>
      %128 = tpu.matmul %126, %127, %cst_66 {dimension_numbers = #tpu.dot_dimension_numbers<[1], [0], [0], [1], [0, 0, 1, 1], [], []>} : vector<8x32xbf16>, vector<32x96xbf16>, vector<8x96xf32> -> vector<8x96xf32>
      %c0_67 = arith.constant 0 : index
      %c0_68 = arith.constant 0 : index
      %129 = vector.load %arg4[%c0_67, %c0_68] : memref<1x96xf32, #tpu.memory_space<vmem>>, vector<1x96xf32>
      %130 = vector.broadcast %129 : vector<1x96xf32> to vector<8x96xf32>
      %131 = arith.addf %128, %130 : vector<8x96xf32>
      %132 = vector.extract_strided_slice %131 {offsets = [0, 0], sizes = [8, 8], strides = [1, 1]} : vector<8x96xf32> to vector<8x8xf32>
      %cst_69 = arith.constant 0.353553385 : f32
      %133 = vector.broadcast %cst_69 : f32 to vector<8x8xf32>
      %134 = arith.mulf %132, %133 : vector<8x8xf32>
      %135 = vector.extract_strided_slice %131 {offsets = [0, 32], sizes = [8, 8], strides = [1, 1]} : vector<8x96xf32> to vector<8x8xf32>
      %136 = vector.extract_strided_slice %131 {offsets = [0, 64], sizes = [8, 8], strides = [1, 1]} : vector<8x96xf32> to vector<8x8xf32>
      %137 = arith.truncf %134 : vector<8x8xf32> to vector<8x8xbf16>
      %c0_70 = arith.constant 0 : index
      %c0_71 = arith.constant 0 : index
      %c0_72 = arith.constant 0 : index
      %138 = vector.load %arg16[%c0_70, %c0_71, %c0_72] : memref<4x8x8xbf16, #tpu.memory_space<vmem>>, vector<1x8x8xbf16>
      %139 = vector.shape_cast %138 : vector<1x8x8xbf16> to vector<8x8xbf16>
      %140 = vector.shape_cast %137 : vector<8x8xbf16> to vector<1x8x8xbf16>
      tpu.vector_store %arg16[%c0_70, %c0_71, %c0_72], %140 {strides = array<i32>} : memref<4x8x8xbf16, #tpu.memory_space<vmem>>, vector<1x8x8xbf16>,
      %141 = arith.truncf %135 : vector<8x8xf32> to vector<8x8xbf16>
      %142 = tpu.transpose %141, [1, 0] : vector<8x8xbf16> -> vector<8x8xbf16>
      %c0_73 = arith.constant 0 : index
      %c0_74 = arith.constant 0 : index
      %c0_75 = arith.constant 0 : index
      %143 = vector.load %arg17[%c0_73, %c0_74, %c0_75] : memref<4x8x8xbf16, #tpu.memory_space<vmem>>, vector<1x8x8xbf16>
      %144 = vector.shape_cast %143 : vector<1x8x8xbf16> to vector<8x8xbf16>
      %145 = vector.shape_cast %142 : vector<8x8xbf16> to vector<1x8x8xbf16>
      tpu.vector_store %arg17[%c0_73, %c0_74, %c0_75], %145 {strides = array<i32>} : memref<4x8x8xbf16, #tpu.memory_space<vmem>>, vector<1x8x8xbf16>,
      %146 = arith.truncf %136 : vector<8x8xf32> to vector<8x8xbf16>
      %c0_76 = arith.constant 0 : index
      %c0_77 = arith.constant 0 : index
      %c0_78 = arith.constant 0 : index
      %147 = vector.load %arg18[%c0_76, %c0_77, %c0_78] : memref<4x8x8xbf16, #tpu.memory_space<vmem>>, vector<1x8x8xbf16>
      %148 = vector.shape_cast %147 : vector<1x8x8xbf16> to vector<8x8xbf16>
      %149 = vector.shape_cast %146 : vector<8x8xbf16> to vector<1x8x8xbf16>
      tpu.vector_store %arg18[%c0_76, %c0_77, %c0_78], %149 {strides = array<i32>} : memref<4x8x8xbf16, #tpu.memory_space<vmem>>, vector<1x8x8xbf16>,
      %150 = vector.extract_strided_slice %131 {offsets = [0, 8], sizes = [8, 8], strides = [1, 1]} : vector<8x96xf32> to vector<8x8xf32>
      %cst_79 = arith.constant 0.353553385 : f32
      %151 = vector.broadcast %cst_79 : f32 to vector<8x8xf32>
      %152 = arith.mulf %150, %151 : vector<8x8xf32>
      %153 = vector.extract_strided_slice %131 {offsets = [0, 40], sizes = [8, 8], strides = [1, 1]} : vector<8x96xf32> to vector<8x8xf32>
      %154 = vector.extract_strided_slice %131 {offsets = [0, 72], sizes = [8, 8], strides = [1, 1]} : vector<8x96xf32> to vector<8x8xf32>
      %155 = arith.truncf %152 : vector<8x8xf32> to vector<8x8xbf16>
      %c1_80 = arith.constant 1 : index
      %c0_81 = arith.constant 0 : index
      %c0_82 = arith.constant 0 : index
      %156 = vector.load %arg16[%c1_80, %c0_81, %c0_82] : memref<4x8x8xbf16, #tpu.memory_space<vmem>>, vector<1x8x8xbf16>
      %157 = vector.shape_cast %156 : vector<1x8x8xbf16> to vector<8x8xbf16>
      %158 = vector.shape_cast %155 : vector<8x8xbf16> to vector<1x8x8xbf16>
      tpu.vector_store %arg16[%c1_80, %c0_81, %c0_82], %158 {strides = array<i32>} : memref<4x8x8xbf16, #tpu.memory_space<vmem>>, vector<1x8x8xbf16>,
      %159 = arith.truncf %153 : vector<8x8xf32> to vector<8x8xbf16>
      %160 = tpu.transpose %159, [1, 0] : vector<8x8xbf16> -> vector<8x8xbf16>
      %c1_83 = arith.constant 1 : index
      %c0_84 = arith.constant 0 : index
      %c0_85 = arith.constant 0 : index
      %161 = vector.load %arg17[%c1_83, %c0_84, %c0_85] : memref<4x8x8xbf16, #tpu.memory_space<vmem>>, vector<1x8x8xbf16>
      %162 = vector.shape_cast %161 : vector<1x8x8xbf16> to vector<8x8xbf16>
      %163 = vector.shape_cast %160 : vector<8x8xbf16> to vector<1x8x8xbf16>
      tpu.vector_store %arg17[%c1_83, %c0_84, %c0_85], %163 {strides = array<i32>} : memref<4x8x8xbf16, #tpu.memory_space<vmem>>, vector<1x8x8xbf16>,
      %164 = arith.truncf %154 : vector<8x8xf32> to vector<8x8xbf16>
      %c1_86 = arith.constant 1 : index
      %c0_87 = arith.constant 0 : index
      %c0_88 = arith.constant 0 : index
      %165 = vector.load %arg18[%c1_86, %c0_87, %c0_88] : memref<4x8x8xbf16, #tpu.memory_space<vmem>>, vector<1x8x8xbf16>
      %166 = vector.shape_cast %165 : vector<1x8x8xbf16> to vector<8x8xbf16>
      %167 = vector.shape_cast %164 : vector<8x8xbf16> to vector<1x8x8xbf16>
      tpu.vector_store %arg18[%c1_86, %c0_87, %c0_88], %167 {strides = array<i32>} : memref<4x8x8xbf16, #tpu.memory_space<vmem>>, vector<1x8x8xbf16>,
      %168 = vector.extract_strided_slice %131 {offsets = [0, 16], sizes = [8, 8], strides = [1, 1]} : vector<8x96xf32> to vector<8x8xf32>
      %cst_89 = arith.constant 0.353553385 : f32
      %169 = vector.broadcast %cst_89 : f32 to vector<8x8xf32>
      %170 = arith.mulf %168, %169 : vector<8x8xf32>
      %171 = vector.extract_strided_slice %131 {offsets = [0, 48], sizes = [8, 8], strides = [1, 1]} : vector<8x96xf32> to vector<8x8xf32>
      %172 = vector.extract_strided_slice %131 {offsets = [0, 80], sizes = [8, 8], strides = [1, 1]} : vector<8x96xf32> to vector<8x8xf32>
      %173 = arith.truncf %170 : vector<8x8xf32> to vector<8x8xbf16>
      %c2_90 = arith.constant 2 : index
      %c0_91 = arith.constant 0 : index
      %c0_92 = arith.constant 0 : index
      %174 = vector.load %arg16[%c2_90, %c0_91, %c0_92] : memref<4x8x8xbf16, #tpu.memory_space<vmem>>, vector<1x8x8xbf16>
      %175 = vector.shape_cast %174 : vector<1x8x8xbf16> to vector<8x8xbf16>
      %176 = vector.shape_cast %173 : vector<8x8xbf16> to vector<1x8x8xbf16>
      tpu.vector_store %arg16[%c2_90, %c0_91, %c0_92], %176 {strides = array<i32>} : memref<4x8x8xbf16, #tpu.memory_space<vmem>>, vector<1x8x8xbf16>,
      %177 = arith.truncf %171 : vector<8x8xf32> to vector<8x8xbf16>
      %178 = tpu.transpose %177, [1, 0] : vector<8x8xbf16> -> vector<8x8xbf16>
      %c2_93 = arith.constant 2 : index
      %c0_94 = arith.constant 0 : index
      %c0_95 = arith.constant 0 : index
      %179 = vector.load %arg17[%c2_93, %c0_94, %c0_95] : memref<4x8x8xbf16, #tpu.memory_space<vmem>>, vector<1x8x8xbf16>
      %180 = vector.shape_cast %179 : vector<1x8x8xbf16> to vector<8x8xbf16>
      %181 = vector.shape_cast %178 : vector<8x8xbf16> to vector<1x8x8xbf16>
      tpu.vector_store %arg17[%c2_93, %c0_94, %c0_95], %181 {strides = array<i32>} : memref<4x8x8xbf16, #tpu.memory_space<vmem>>, vector<1x8x8xbf16>,
      %182 = arith.truncf %172 : vector<8x8xf32> to vector<8x8xbf16>
      %c2_96 = arith.constant 2 : index
      %c0_97 = arith.constant 0 : index
      %c0_98 = arith.constant 0 : index
      %183 = vector.load %arg18[%c2_96, %c0_97, %c0_98] : memref<4x8x8xbf16, #tpu.memory_space<vmem>>, vector<1x8x8xbf16>
      %184 = vector.shape_cast %183 : vector<1x8x8xbf16> to vector<8x8xbf16>
      %185 = vector.shape_cast %182 : vector<8x8xbf16> to vector<1x8x8xbf16>
      tpu.vector_store %arg18[%c2_96, %c0_97, %c0_98], %185 {strides = array<i32>} : memref<4x8x8xbf16, #tpu.memory_space<vmem>>, vector<1x8x8xbf16>,
      %186 = vector.extract_strided_slice %131 {offsets = [0, 24], sizes = [8, 8], strides = [1, 1]} : vector<8x96xf32> to vector<8x8xf32>
      %cst_99 = arith.constant 0.353553385 : f32
      %187 = vector.broadcast %cst_99 : f32 to vector<8x8xf32>
      %188 = arith.mulf %186, %187 : vector<8x8xf32>
      %189 = vector.extract_strided_slice %131 {offsets = [0, 56], sizes = [8, 8], strides = [1, 1]} : vector<8x96xf32> to vector<8x8xf32>
      %190 = vector.extract_strided_slice %131 {offsets = [0, 88], sizes = [8, 8], strides = [1, 1]} : vector<8x96xf32> to vector<8x8xf32>
      %191 = arith.truncf %188 : vector<8x8xf32> to vector<8x8xbf16>
      %c3_100 = arith.constant 3 : index
      %c0_101 = arith.constant 0 : index
      %c0_102 = arith.constant 0 : index
      %192 = vector.load %arg16[%c3_100, %c0_101, %c0_102] : memref<4x8x8xbf16, #tpu.memory_space<vmem>>, vector<1x8x8xbf16>
      %193 = vector.shape_cast %192 : vector<1x8x8xbf16> to vector<8x8xbf16>
      %194 = vector.shape_cast %191 : vector<8x8xbf16> to vector<1x8x8xbf16>
      tpu.vector_store %arg16[%c3_100, %c0_101, %c0_102], %194 {strides = array<i32>} : memref<4x8x8xbf16, #tpu.memory_space<vmem>>, vector<1x8x8xbf16>,
      %195 = arith.truncf %189 : vector<8x8xf32> to vector<8x8xbf16>
      %196 = tpu.transpose %195, [1, 0] : vector<8x8xbf16> -> vector<8x8xbf16>
      %c3_103 = arith.constant 3 : index
      %c0_104 = arith.constant 0 : index
      %c0_105 = arith.constant 0 : index
      %197 = vector.load %arg17[%c3_103, %c0_104, %c0_105] : memref<4x8x8xbf16, #tpu.memory_space<vmem>>, vector<1x8x8xbf16>
      %198 = vector.shape_cast %197 : vector<1x8x8xbf16> to vector<8x8xbf16>
      %199 = vector.shape_cast %196 : vector<8x8xbf16> to vector<1x8x8xbf16>
      tpu.vector_store %arg17[%c3_103, %c0_104, %c0_105], %199 {strides = array<i32>} : memref<4x8x8xbf16, #tpu.memory_space<vmem>>, vector<1x8x8xbf16>,
      %200 = arith.truncf %190 : vector<8x8xf32> to vector<8x8xbf16>
      %c3_106 = arith.constant 3 : index
      %c0_107 = arith.constant 0 : index
      %c0_108 = arith.constant 0 : index
      %201 = vector.load %arg18[%c3_106, %c0_107, %c0_108] : memref<4x8x8xbf16, #tpu.memory_space<vmem>>, vector<1x8x8xbf16>
      %202 = vector.shape_cast %201 : vector<1x8x8xbf16> to vector<8x8xbf16>
      %203 = vector.shape_cast %200 : vector<8x8xbf16> to vector<1x8x8xbf16>
      tpu.vector_store %arg18[%c3_106, %c0_107, %c0_108], %203 {strides = array<i32>} : memref<4x8x8xbf16, #tpu.memory_space<vmem>>, vector<1x8x8xbf16>,
    } else {
    }
    %c8_i32 = arith.constant 8 : i32
    %3 = arith.muli %arg1, %c8_i32 : i32
    %4 = tpu.assume_multiple %3, 8 : i32
    %c0 = arith.constant 0 : index
    %5 = arith.index_cast %4 : i32 to index
    %c0_1 = arith.constant 0 : index
    %6 = vector.load %arg2[%c0, %5, %c0_1] : memref<1x8x32xbf16, #tpu.memory_space<vmem>>, vector<1x8x32xbf16>
    %7 = vector.shape_cast %6 : vector<1x8x32xbf16> to vector<8x32xbf16>
    %8 = arith.extf %7 : vector<8x32xbf16> to vector<8x32xf32>
    %cst = arith.constant 0.000000e+00 : f32
    %9 = vector.broadcast %cst : f32 to vector<8x32xf32>
    %c0_2 = arith.constant 0 : index
    %10 = arith.index_cast %4 : i32 to index
    %c0_3 = arith.constant 0 : index
    %11 = vector.load %arg16[%c0_2, %10, %c0_3] : memref<4x8x8xbf16, #tpu.memory_space<vmem>>, vector<4x8x8xbf16>
    %c0_4 = arith.constant 0 : index
    %c0_5 = arith.constant 0 : index
    %c0_6 = arith.constant 0 : index
    %12 = vector.load %arg17[%c0_4, %c0_5, %c0_6] : memref<4x8x8xbf16, #tpu.memory_space<vmem>>, vector<4x8x8xbf16>
    %c0_7 = arith.constant 0 : index
    %c0_8 = arith.constant 0 : index
    %c0_9 = arith.constant 0 : index
    %13 = vector.load %arg18[%c0_7, %c0_8, %c0_9] : memref<4x8x8xbf16, #tpu.memory_space<vmem>>, vector<4x8x8xbf16>
    "tpu.trace_start"() <{level = 10 : i32, message = "hqd,hdk->hqk"}> : () -> ()
    %cst_10 = arith.constant dense<0.000000e+00> : vector<4x8x8xf32>
    %14 = tpu.matmul %11, %12, %cst_10 {dimension_numbers = #tpu.dot_dimension_numbers<[2], [1], [1], [2], [0, 0, 0, 1, 1, 2], [0], [0]>} : vector<4x8x8xbf16>, vector<4x8x8xbf16>, vector<4x8x8xf32> -> vector<4x8x8xf32>
    "tpu.trace_stop"() : () -> ()
    %cst_11 = arith.constant dense<0xFF800000> : vector<4x8xf32>
    %15 = vector.multi_reduction <maximumf>, %14, %cst_11 [2] : vector<4x8x8xf32> to vector<4x8xf32>
    %16 = vector.shape_cast %15 : vector<4x8xf32> to vector<4x8x1xf32>
    %17 = vector.broadcast %16 : vector<4x8x1xf32> to vector<4x8x8xf32>
    %18 = arith.subf %14, %17 : vector<4x8x8xf32>
    %19 = math.exp %18 : vector<4x8x8xf32>
    %cst_12 = arith.constant dense<0.000000e+00> : vector<4x8xf32>
    %20 = vector.multi_reduction <add>, %19, %cst_12 [2] : vector<4x8x8xf32> to vector<4x8xf32>
    %21 = vector.shape_cast %20 : vector<4x8xf32> to vector<4x8x1xf32>
    %22 = arith.truncf %19 : vector<4x8x8xf32> to vector<4x8x8xbf16>
    "tpu.trace_start"() <{level = 10 : i32, message = "hqk,hkd->hqd"}> : () -> ()
    %cst_13 = arith.constant dense<0.000000e+00> : vector<4x8x8xf32>
    %23 = tpu.matmul %22, %13, %cst_13 {dimension_numbers = #tpu.dot_dimension_numbers<[2], [1], [1], [2], [0, 0, 0, 1, 1, 2], [0], [0]>} : vector<4x8x8xbf16>, vector<4x8x8xbf16>, vector<4x8x8xf32> -> vector<4x8x8xf32>
    "tpu.trace_stop"() : () -> ()
    %24 = tpu.reciprocal %21 : vector<4x8x1xf32> -> vector<4x8x1xf32>
    %25 = vector.broadcast %24 : vector<4x8x1xf32> to vector<4x8x8xf32>
    %26 = arith.mulf %23, %25 : vector<4x8x8xf32>
    %27 = vector.extract_strided_slice %26 {offsets = [0, 0, 0], sizes = [1, 8, 8], strides = [1, 1, 1]} : vector<4x8x8xf32> to vector<1x8x8xf32>
    %28 = vector.shape_cast %27 : vector<1x8x8xf32> to vector<8x8xf32>
    %29 = arith.truncf %28 : vector<8x8xf32> to vector<8x8xbf16>
    %c0_14 = arith.constant 0 : index
    %c0_15 = arith.constant 0 : index
    %c0_16 = arith.constant 0 : index
    %30 = vector.load %arg5[%c0_14, %c0_15, %c0_16] : memref<4x8x32xbf16, #tpu.memory_space<vmem>>, vector<1x8x32xbf16>
    %31 = vector.shape_cast %30 : vector<1x8x32xbf16> to vector<8x32xbf16>
    %cst_17 = arith.constant dense<0.000000e+00> : vector<8x32xf32>
    %32 = tpu.matmul %29, %31, %cst_17 {dimension_numbers = #tpu.dot_dimension_numbers<[1], [0], [0], [1], [0, 0, 1, 1], [], []>} : vector<8x8xbf16>, vector<8x32xbf16>, vector<8x32xf32> -> vector<8x32xf32>
    %33 = arith.addf %9, %32 : vector<8x32xf32>
    %34 = vector.extract_strided_slice %26 {offsets = [1, 0, 0], sizes = [1, 8, 8], strides = [1, 1, 1]} : vector<4x8x8xf32> to vector<1x8x8xf32>
    %35 = vector.shape_cast %34 : vector<1x8x8xf32> to vector<8x8xf32>
    %36 = arith.truncf %35 : vector<8x8xf32> to vector<8x8xbf16>
    %c1 = arith.constant 1 : index
    %c0_18 = arith.constant 0 : index
    %c0_19 = arith.constant 0 : index
    %37 = vector.load %arg5[%c1, %c0_18, %c0_19] : memref<4x8x32xbf16, #tpu.memory_space<vmem>>, vector<1x8x32xbf16>
    %38 = vector.shape_cast %37 : vector<1x8x32xbf16> to vector<8x32xbf16>
    %cst_20 = arith.constant dense<0.000000e+00> : vector<8x32xf32>
    %39 = tpu.matmul %36, %38, %cst_20 {dimension_numbers = #tpu.dot_dimension_numbers<[1], [0], [0], [1], [0, 0, 1, 1], [], []>} : vector<8x8xbf16>, vector<8x32xbf16>, vector<8x32xf32> -> vector<8x32xf32>
    %40 = arith.addf %33, %39 : vector<8x32xf32>
    %41 = vector.extract_strided_slice %26 {offsets = [2, 0, 0], sizes = [1, 8, 8], strides = [1, 1, 1]} : vector<4x8x8xf32> to vector<1x8x8xf32>
    %42 = vector.shape_cast %41 : vector<1x8x8xf32> to vector<8x8xf32>
    %43 = arith.truncf %42 : vector<8x8xf32> to vector<8x8xbf16>
    %c2 = arith.constant 2 : index
    %c0_21 = arith.constant 0 : index
    %c0_22 = arith.constant 0 : index
    %44 = vector.load %arg5[%c2, %c0_21, %c0_22] : memref<4x8x32xbf16, #tpu.memory_space<vmem>>, vector<1x8x32xbf16>
    %45 = vector.shape_cast %44 : vector<1x8x32xbf16> to vector<8x32xbf16>
    %cst_23 = arith.constant dense<0.000000e+00> : vector<8x32xf32>
    %46 = tpu.matmul %43, %45, %cst_23 {dimension_numbers = #tpu.dot_dimension_numbers<[1], [0], [0], [1], [0, 0, 1, 1], [], []>} : vector<8x8xbf16>, vector<8x32xbf16>, vector<8x32xf32> -> vector<8x32xf32>
    %47 = arith.addf %40, %46 : vector<8x32xf32>
    %48 = vector.extract_strided_slice %26 {offsets = [3, 0, 0], sizes = [1, 8, 8], strides = [1, 1, 1]} : vector<4x8x8xf32> to vector<1x8x8xf32>
    %49 = vector.shape_cast %48 : vector<1x8x8xf32> to vector<8x8xf32>
    %50 = arith.truncf %49 : vector<8x8xf32> to vector<8x8xbf16>
    %c3 = arith.constant 3 : index
    %c0_24 = arith.constant 0 : index
    %c0_25 = arith.constant 0 : index
    %51 = vector.load %arg5[%c3, %c0_24, %c0_25] : memref<4x8x32xbf16, #tpu.memory_space<vmem>>, vector<1x8x32xbf16>
    %52 = vector.shape_cast %51 : vector<1x8x32xbf16> to vector<8x32xbf16>
    %cst_26 = arith.constant dense<0.000000e+00> : vector<8x32xf32>
    %53 = tpu.matmul %50, %52, %cst_26 {dimension_numbers = #tpu.dot_dimension_numbers<[1], [0], [0], [1], [0, 0, 1, 1], [], []>} : vector<8x8xbf16>, vector<8x32xbf16>, vector<8x32xf32> -> vector<8x32xf32>
    %54 = arith.addf %47, %53 : vector<8x32xf32>
    %55 = arith.addf %8, %54 : vector<8x32xf32>
    %c0_27 = arith.constant 0 : index
    %c0_28 = arith.constant 0 : index
    %56 = vector.load %arg6[%c0_27, %c0_28] : memref<1x32xf32, #tpu.memory_space<vmem>>, vector<1x32xf32>
    %57 = vector.broadcast %56 : vector<1x32xf32> to vector<8x32xf32>
    %58 = arith.addf %55, %57 : vector<8x32xf32>
    %c0_29 = arith.constant 0 : index
    %c0_30 = arith.constant 0 : index
    %59 = vector.load %arg7[%c0_29, %c0_30] : memref<1x32xf32, #tpu.memory_space<vmem>>, vector<1x32xf32>
    %c0_31 = arith.constant 0 : index
    %c0_32 = arith.constant 0 : index
    %60 = vector.load %arg8[%c0_31, %c0_32] : memref<1x32xf32, #tpu.memory_space<vmem>>, vector<1x32xf32>
    %cst_33 = arith.constant dense<0.000000e+00> : vector<8xf32>
    %61 = vector.multi_reduction <add>, %58, %cst_33 [1] : vector<8x32xf32> to vector<8xf32>
    %62 = vector.shape_cast %61 : vector<8xf32> to vector<8x1xf32>
    %cst_34 = arith.constant 3.200000e+01 : f32
    %63 = vector.broadcast %cst_34 : f32 to vector<8x1xf32>
    %64 = arith.divf %62, %63 : vector<8x1xf32>
    %65 = vector.broadcast %64 : vector<8x1xf32> to vector<8x32xf32>
    %66 = arith.subf %58, %65 : vector<8x32xf32>
    %67 = arith.mulf %66, %66 : vector<8x32xf32>
    %cst_35 = arith.constant dense<0.000000e+00> : vector<8xf32>
    %68 = vector.multi_reduction <add>, %67, %cst_35 [1] : vector<8x32xf32> to vector<8xf32>
    %69 = vector.shape_cast %68 : vector<8xf32> to vector<8x1xf32>
    %cst_36 = arith.constant 3.200000e+01 : f32
    %70 = vector.broadcast %cst_36 : f32 to vector<8x1xf32>
    %71 = arith.divf %69, %70 : vector<8x1xf32>
    %cst_37 = arith.constant 9.99999974E-6 : f32
    %72 = vector.broadcast %cst_37 : f32 to vector<8x1xf32>
    %73 = arith.addf %71, %72 : vector<8x1xf32>
    %74 = math.rsqrt %73 : vector<8x1xf32>
    %75 = vector.broadcast %64 : vector<8x1xf32> to vector<8x32xf32>
    %76 = arith.subf %58, %75 : vector<8x32xf32>
    %77 = vector.broadcast %74 : vector<8x1xf32> to vector<8x32xf32>
    %78 = arith.mulf %76, %77 : vector<8x32xf32>
    %79 = vector.broadcast %59 : vector<1x32xf32> to vector<8x32xf32>
    %80 = arith.mulf %78, %79 : vector<8x32xf32>
    %81 = vector.broadcast %60 : vector<1x32xf32> to vector<8x32xf32>
    %82 = arith.addf %80, %81 : vector<8x32xf32>
    %83 = arith.truncf %82 : vector<8x32xf32> to vector<8x32xbf16>
    %c0_38 = arith.constant 0 : index
    %c0_39 = arith.constant 0 : index
    %84 = vector.load %arg9[%c0_38, %c0_39] : memref<32x64xbf16, #tpu.memory_space<vmem>>, vector<32x64xbf16>
    %cst_40 = arith.constant dense<0.000000e+00> : vector<8x64xf32>
    %85 = tpu.matmul %83, %84, %cst_40 {dimension_numbers = #tpu.dot_dimension_numbers<[1], [0], [0], [1], [0, 0, 1, 1], [], []>} : vector<8x32xbf16>, vector<32x64xbf16>, vector<8x64xf32> -> vector<8x64xf32>
    %c0_41 = arith.constant 0 : index
    %c0_42 = arith.constant 0 : index
    %86 = vector.load %arg10[%c0_41, %c0_42] : memref<1x64xf32, #tpu.memory_space<vmem>>, vector<1x64xf32>
    %87 = vector.broadcast %86 : vector<1x64xf32> to vector<8x64xf32>
    %88 = arith.addf %85, %87 : vector<8x64xf32>
    %cst_43 = arith.constant 0.000000e+00 : f32
    %89 = vector.broadcast %cst_43 : f32 to vector<8x64xf32>
    %90 = arith.maximumf %88, %89 : vector<8x64xf32>
    %91 = arith.truncf %90 : vector<8x64xf32> to vector<8x64xbf16>
    %c0_44 = arith.constant 0 : index
    %c0_45 = arith.constant 0 : index
    %92 = vector.load %arg11[%c0_44, %c0_45] : memref<64x32xbf16, #tpu.memory_space<vmem>>, vector<64x32xbf16>
    %cst_46 = arith.constant dense<0.000000e+00> : vector<8x32xf32>
    %93 = tpu.matmul %91, %92, %cst_46 {dimension_numbers = #tpu.dot_dimension_numbers<[1], [0], [0], [1], [0, 0, 1, 1], [], []>} : vector<8x64xbf16>, vector<64x32xbf16>, vector<8x32xf32> -> vector<8x32xf32>
    %c0_47 = arith.constant 0 : index
    %c0_48 = arith.constant 0 : index
    %94 = vector.load %arg12[%c0_47, %c0_48] : memref<1x32xf32, #tpu.memory_space<vmem>>, vector<1x32xf32>
    %95 = vector.broadcast %94 : vector<1x32xf32> to vector<8x32xf32>
    %96 = arith.addf %93, %95 : vector<8x32xf32>
    %97 = arith.addf %82, %96 : vector<8x32xf32>
    %c0_49 = arith.constant 0 : index
    %c0_50 = arith.constant 0 : index
    %98 = vector.load %arg13[%c0_49, %c0_50] : memref<1x32xf32, #tpu.memory_space<vmem>>, vector<1x32xf32>
    %c0_51 = arith.constant 0 : index
    %c0_52 = arith.constant 0 : index
    %99 = vector.load %arg14[%c0_51, %c0_52] : memref<1x32xf32, #tpu.memory_space<vmem>>, vector<1x32xf32>
    %cst_53 = arith.constant dense<0.000000e+00> : vector<8xf32>
    %100 = vector.multi_reduction <add>, %97, %cst_53 [1] : vector<8x32xf32> to vector<8xf32>
    %101 = vector.shape_cast %100 : vector<8xf32> to vector<8x1xf32>
    %cst_54 = arith.constant 3.200000e+01 : f32
    %102 = vector.broadcast %cst_54 : f32 to vector<8x1xf32>
    %103 = arith.divf %101, %102 : vector<8x1xf32>
    %104 = vector.broadcast %103 : vector<8x1xf32> to vector<8x32xf32>
    %105 = arith.subf %97, %104 : vector<8x32xf32>
    %106 = arith.mulf %105, %105 : vector<8x32xf32>
    %cst_55 = arith.constant dense<0.000000e+00> : vector<8xf32>
    %107 = vector.multi_reduction <add>, %106, %cst_55 [1] : vector<8x32xf32> to vector<8xf32>
    %108 = vector.shape_cast %107 : vector<8xf32> to vector<8x1xf32>
    %cst_56 = arith.constant 3.200000e+01 : f32
    %109 = vector.broadcast %cst_56 : f32 to vector<8x1xf32>
    %110 = arith.divf %108, %109 : vector<8x1xf32>
    %cst_57 = arith.constant 9.99999974E-6 : f32
    %111 = vector.broadcast %cst_57 : f32 to vector<8x1xf32>
    %112 = arith.addf %110, %111 : vector<8x1xf32>
    %113 = math.rsqrt %112 : vector<8x1xf32>
    %114 = vector.broadcast %103 : vector<8x1xf32> to vector<8x32xf32>
    %115 = arith.subf %97, %114 : vector<8x32xf32>
    %116 = vector.broadcast %113 : vector<8x1xf32> to vector<8x32xf32>
    %117 = arith.mulf %115, %116 : vector<8x32xf32>
    %118 = vector.broadcast %98 : vector<1x32xf32> to vector<8x32xf32>
    %119 = arith.mulf %117, %118 : vector<8x32xf32>
    %120 = vector.broadcast %99 : vector<1x32xf32> to vector<8x32xf32>
    %121 = arith.addf %119, %120 : vector<8x32xf32>
    %c0_58 = arith.constant 0 : index
    %c0_59 = arith.constant 0 : index
    %c0_60 = arith.constant 0 : index
    %122 = vector.load %arg15[%c0_58, %c0_59, %c0_60] : memref<1x8x32xf32, #tpu.memory_space<vmem>>, vector<1x8x32xf32>
    %123 = vector.shape_cast %122 : vector<1x8x32xf32> to vector<8x32xf32>
    %124 = vector.shape_cast %121 : vector<8x32xf32> to vector<1x8x32xf32>
    tpu.vector_store %arg15[%c0_58, %c0_59, %c0_60], %124 {strides = array<i32>} : memref<1x8x32xf32, #tpu.memory_space<vmem>>, vector<1x8x32xf32>,
    return
  }
  func.func @transform_0(%arg0: i32, %arg1: i32) -> (i32, i32, i32) {
    %c0_i32 = arith.constant 0 : i32
    %c0_i32_0 = arith.constant 0 : i32
    %c0_i32_1 = arith.constant 0 : i32
    return %arg0, %c0_i32, %c0_i32_0 : i32, i32, i32
  }
  func.func @transform_1(%arg0: i32, %arg1: i32) -> (i32, i32) {
    %c0_i32 = arith.constant 0 : i32
    %c0_i32_0 = arith.constant 0 : i32
    %c0_i32_1 = arith.constant 0 : i32
    return %c0_i32, %c0_i32_0 : i32, i32
  }
  func.func @transform_2(%arg0: i32, %arg1: i32) -> (i32, i32) {
    %c0_i32 = arith.constant 0 : i32
    %c0_i32_0 = arith.constant 0 : i32
    %c0_i32_1 = arith.constant 0 : i32
    return %c0_i32, %c0_i32_0 : i32, i32
  }
  func.func @transform_3(%arg0: i32, %arg1: i32) -> (i32, i32, i32) {
    %c0_i32 = arith.constant 0 : i32
    %c0_i32_0 = arith.constant 0 : i32
    %c0_i32_1 = arith.constant 0 : i32
    %c0_i32_2 = arith.constant 0 : i32
    return %c0_i32, %c0_i32_0, %c0_i32_1 : i32, i32, i32
  }
  func.func @transform_4(%arg0: i32, %arg1: i32) -> (i32, i32) {
    %c0_i32 = arith.constant 0 : i32
    %c0_i32_0 = arith.constant 0 : i32
    %c0_i32_1 = arith.constant 0 : i32
    return %c0_i32, %c0_i32_0 : i32, i32
  }
  func.func @transform_5(%arg0: i32, %arg1: i32) -> (i32, i32) {
    %c0_i32 = arith.constant 0 : i32
    %c0_i32_0 = arith.constant 0 : i32
    %c0_i32_1 = arith.constant 0 : i32
    return %c0_i32, %c0_i32_0 : i32, i32
  }
  func.func @transform_6(%arg0: i32, %arg1: i32) -> (i32, i32) {
    %c0_i32 = arith.constant 0 : i32
    %c0_i32_0 = arith.constant 0 : i32
    %c0_i32_1 = arith.constant 0 : i32
    return %c0_i32, %c0_i32_0 : i32, i32
  }
  func.func @transform_7(%arg0: i32, %arg1: i32) -> (i32, i32) {
    %c0_i32 = arith.constant 0 : i32
    %c0_i32_0 = arith.constant 0 : i32
    %c0_i32_1 = arith.constant 0 : i32
    return %c0_i32, %c0_i32_0 : i32, i32
  }
  func.func @transform_8(%arg0: i32, %arg1: i32) -> (i32, i32) {
    %c0_i32 = arith.constant 0 : i32
    %c0_i32_0 = arith.constant 0 : i32
    %c0_i32_1 = arith.constant 0 : i32
    return %c0_i32, %c0_i32_0 : i32, i32
  }
  func.func @transform_9(%arg0: i32, %arg1: i32) -> (i32, i32) {
    %c0_i32 = arith.constant 0 : i32
    %c0_i32_0 = arith.constant 0 : i32
    %c0_i32_1 = arith.constant 0 : i32
    return %c0_i32, %c0_i32_0 : i32, i32
  }
  func.func @transform_10(%arg0: i32, %arg1: i32) -> (i32, i32) {
    %c0_i32 = arith.constant 0 : i32
    %c0_i32_0 = arith.constant 0 : i32
    %c0_i32_1 = arith.constant 0 : i32
    return %c0_i32, %c0_i32_0 : i32, i32
  }
  func.func @transform_11(%arg0: i32, %arg1: i32) -> (i32, i32) {
    %c0_i32 = arith.constant 0 : i32
    %c0_i32_0 = arith.constant 0 : i32
    %c0_i32_1 = arith.constant 0 : i32
    return %c0_i32, %c0_i32_0 : i32, i32
  }
  func.func @transform_12(%arg0: i32, %arg1: i32) -> (i32, i32) {
    %c0_i32 = arith.constant 0 : i32
    %c0_i32_0 = arith.constant 0 : i32
    %c0_i32_1 = arith.constant 0 : i32
    return %c0_i32, %c0_i32_0 : i32, i32
  }
  func.func @transform_13(%arg0: i32, %arg1: i32) -> (i32, i32, i32) {
    %c0_i32 = arith.constant 0 : i32
    %c0_i32_0 = arith.constant 0 : i32
    return %arg0, %arg1, %c0_i32 : i32, i32, i32
  }
}

</mosaic_0001>

<llo_original>
// kernel: tpu_custom_call.1
$region0: #{tpu_custom_call.1}
  #allocation0 [shape = 'u32[]', space=smem, size = 0x4, offset = 0x4, fixed_abs, tag = 'smem constant byte address 0x4 - core index']
  #allocation1 [shape = 'u32[144,128]{1,0:T(1,128)}', space=vmem, size = 0x12000, scoped, tag = 'internal scratch']
  #allocation2 [shape = 'bf16[4,8,8]{2,1,0:T(8,128)(2,1)}', space=vmem, size = 0x2000, scoped, tag = 'scratch operand']
  #allocation3 [shape = 'bf16[4,8,8]{2,1,0:T(8,128)(2,1)}', space=vmem, size = 0x2000, scoped, tag = 'scratch operand']
  #allocation4 [shape = 'bf16[4,8,8]{2,1,0:T(8,128)(2,1)}', space=vmem, size = 0x2000, scoped, tag = 'scratch operand']
  %s0 = inlined_call_operand.hbm [shape: bf16[2,8,32], index: 0, kind: input, shape index: {}]
  %s1 = inlined_call_operand.vmem [shape: bf16[32,96], index: 1, kind: input, shape index: {}]
  %s2 = inlined_call_operand.vmem [shape: f32[1,96], index: 2, kind: input, shape index: {}]
  %s3 = inlined_call_operand.vmem [shape: bf16[4,8,32], index: 3, kind: input, shape index: {}]
  %s4 = inlined_call_operand.vmem [shape: f32[1,32], index: 4, kind: input, shape index: {}]
  %s5 = inlined_call_operand.vmem [shape: f32[1,32], index: 5, kind: input, shape index: {}]
  %s6 = inlined_call_operand.vmem [shape: f32[1,32], index: 6, kind: input, shape index: {}]
  %s7 = inlined_call_operand.vmem [shape: bf16[32,64], index: 7, kind: input, shape index: {}]
  %s8 = inlined_call_operand.vmem [shape: f32[1,64], index: 8, kind: input, shape index: {}]
  %s9 = inlined_call_operand.vmem [shape: bf16[64,32], index: 9, kind: input, shape index: {}]
  %s10 = inlined_call_operand.vmem [shape: f32[1,32], index: 10, kind: input, shape index: {}]
  %s11 = inlined_call_operand.vmem [shape: f32[1,32], index: 11, kind: input, shape index: {}]
  %s12 = inlined_call_operand.vmem [shape: f32[1,32], index: 12, kind: input, shape index: {}]
  %s13 = inlined_call_operand.hbm [shape: f32[2,8,32], index: 13, kind: output, shape index: {}]
  %s14 = sld [smem:[#allocation0]]
  $region93: #{tpu_custom_call.1} parent=0
    _
  %s16 = ssub.s32 1, %s14
  %s17 = scalar_select 0, %s16, %s14
  $region1: #{tpu_custom_call.1} parent=0
    #allocation5 [shape = 'u8[4096]{0}', space=vmem, size = 0x1000, scoped, tag = 'input window, operand 0']
    #allocation6 [shape = 's32[2]{0}', space=sflag, size = 0x8, scoped, tag = 'scoped memory for tpu_custom_call.1']
    #allocation7 [shape = 's32[2]{0}', space=sflag, size = 0x8, scoped, tag = 'scoped memory for tpu_custom_call.1']
    #allocation8 [shape = 'u8[8192]{0}', space=vmem, size = 0x2000, scoped, tag = 'output window, operand 0']
    %18 = vsyncpa [#allocation6], 0
    %s19 = scalar_lea.sflag [#allocation6], 1
    %20 = vsyncpa %s19, 0
    %21 = vsyncpa [#allocation7], 0
    %s22 = scalar_lea.sflag [#allocation7], 1
    %23 = vsyncpa %s22, 0
    loop: start=0, step=1, limit=4
    $region2: #{tpu_custom_call.1} parent=1 // loop_pre_header
      _
    $region3: #{tpu_custom_call.1} parent=1 // loop_header
      %s25 = sphi 0, %s29
      %p26 = scmp.ge.s32.totalorder %s25, 4
      %s32 = sphi 0, %s44
      %s33 = sphi 0, %s40
      %s34 = sphi 0, %s32
      %s35 = sphi 0, %s33
      %s36 = sphi 0, %s34
      %s37 = sphi 0, %s35
      %s47 = sphi 0, %s49
      %s50 = sphi 0, %s47
      %s51 = sphi 0, %s50
      %s67 = sphi 0, %s51
      %s71 = sphi 0, %s71
      %s73 = sphi 0, %s71
      %s74 = sphi 0, %s73
      %s88 = sphi 0, %s74
      %s92 = sphi 0, %s92
      %s94 = sphi 0, %s92
      %s95 = sphi 0, %s94
      %s109 = sphi 0, %s95
      %s113 = sphi 0, %s113
      %s115 = sphi 0, %s113
      %s116 = sphi 0, %s115
      %s130 = sphi 0, %s116
      %s134 = sphi 0, %s134
      %s136 = sphi 0, %s134
      %s137 = sphi 0, %s136
      %s151 = sphi 0, %s137
      %s155 = sphi 0, %s155
      %s157 = sphi 0, %s155
      %s158 = sphi 0, %s157
      %s172 = sphi 0, %s158
      %s176 = sphi 0, %s176
      %s178 = sphi 0, %s176
      %s179 = sphi 0, %s178
      %s193 = sphi 0, %s179
      %s197 = sphi 0, %s197
      %s199 = sphi 0, %s197
      %s200 = sphi 0, %s199
      %s214 = sphi 0, %s200
      %s218 = sphi 0, %s218
      %s220 = sphi 0, %s218
      %s221 = sphi 0, %s220
      %s235 = sphi 0, %s221
      %s239 = sphi 0, %s239
      %s241 = sphi 0, %s239
      %s242 = sphi 0, %s241
      %s256 = sphi 0, %s242
      %s260 = sphi 0, %s260
      %s262 = sphi 0, %s260
      %s263 = sphi 0, %s262
      %s277 = sphi 0, %s263
      %s281 = sphi 0, %s281
      %s283 = sphi 0, %s281
      %s284 = sphi 0, %s283
      %s298 = sphi 0, %s284
      %s302 = sphi 0, %s302
      %s304 = sphi 0, %s302
      %s305 = sphi 0, %s304
      %s319 = sphi 0, %s305
      %s327 = sphi 0, %s329
      %s330 = sphi 0, %s327
      %s331 = sphi 0, %s330
      %s347 = sphi 0, %s331
    $region4: #{tpu_custom_call.1} parent=1 // loop_header_branch
      %28 = sbr.rel (%p26) target = $region8
    $region5: #{tpu_custom_call.1} parent=1 // loop_body
      %s30 = ssub.s32 %s25, 1
      %s31 = ssub.s32 %s25, 2
      %s38 = sadd.s32 1, %s33
      %p39 = scmp.ge.s32.totalorder %s38, 1
      %s40 = scalar_select %p39, 0, %s38
      %s41 = sadd.s32 1, %s32
      %s42 = scalar_select %p39, %s41, %s32
      %p43 = scmp.ge.s32.totalorder %s42, 2
      %s44 = scalar_select %p43, 0, %s42
      %s45 = ssub.s32 %s32, %s44
      %p46 = scmp.eq.s32.totalorder %s45, 0
      %s48 = sadd.s32 %s47, 1
      %s49 = scalar_select %p46, %s47, %s48
      %p52 = pneg %p46
      %p53 = scmp.eq.s32.totalorder %s25, 1
      %p54 = por %p52, %p53
      %p55 = scmp.ne.s32.totalorder %s47, %s50
      %p56 = scmp.eq.s32.totalorder %s25, 0
      %p57 = por %p55, %p56
      %p58 = scmp.ne.s32.totalorder %s47, %s50
      %p59 = scmp.eq.s32.totalorder %s30, 1
      %p60 = por %p58, %p59
      %p61 = scmp.ne.s32.totalorder %s50, %s51
      %p62 = scmp.eq.s32.totalorder %s30, 0
      %p63 = por %p61, %p62
      %p64 = scmp.ne.s32.totalorder %s50, %s51
      %p65 = scmp.eq.s32.totalorder %s31, 1
      %p66 = por %p64, %p65
      %p68 = scmp.ne.s32.totalorder %s51, %s67
      %p69 = scmp.eq.s32.totalorder %s31, 0
      %p70 = por %p68, %p69
      %s72 = sadd.s32 %s71, 1
      %p75 = scmp.eq.s32.totalorder %s25, 1
      %p76 = scmp.ne.s32.totalorder %s71, %s73
      %p77 = scmp.eq.s32.totalorder %s25, 0
      %p78 = por %p76, %p77
      %p79 = scmp.ne.s32.totalorder %s71, %s73
      %p80 = scmp.eq.s32.totalorder %s30, 1
      %p81 = por %p79, %p80
      %p82 = scmp.ne.s32.totalorder %s73, %s74
      %p83 = scmp.eq.s32.totalorder %s30, 0
      %p84 = por %p82, %p83
      %p85 = scmp.ne.s32.totalorder %s73, %s74
      %p86 = scmp.eq.s32.totalorder %s31, 1
      %p87 = por %p85, %p86
      %p89 = scmp.ne.s32.totalorder %s74, %s88
      %p90 = scmp.eq.s32.totalorder %s31, 0
      %p91 = por %p89, %p90
      %s93 = sadd.s32 %s92, 1
      %p96 = scmp.eq.s32.totalorder %s25, 1
      %p97 = scmp.ne.s32.totalorder %s92, %s94
      %p98 = scmp.eq.s32.totalorder %s25, 0
      %p99 = por %p97, %p98
      %p100 = scmp.ne.s32.totalorder %s92, %s94
      %p101 = scmp.eq.s32.totalorder %s30, 1
      %p102 = por %p100, %p101
      %p103 = scmp.ne.s32.totalorder %s94, %s95
      %p104 = scmp.eq.s32.totalorder %s30, 0
      %p105 = por %p103, %p104
      %p106 = scmp.ne.s32.totalorder %s94, %s95
      %p107 = scmp.eq.s32.totalorder %s31, 1
      %p108 = por %p106, %p107
      %p110 = scmp.ne.s32.totalorder %s95, %s109
      %p111 = scmp.eq.s32.totalorder %s31, 0
      %p112 = por %p110, %p111
      %s114 = sadd.s32 %s113, 1
      %p117 = scmp.eq.s32.totalorder %s25, 1
      %p118 = scmp.ne.s32.totalorder %s113, %s115
      %p119 = scmp.eq.s32.totalorder %s25, 0
      %p120 = por %p118, %p119
      %p121 = scmp.ne.s32.totalorder %s113, %s115
      %p122 = scmp.eq.s32.totalorder %s30, 1
      %p123 = por %p121, %p122
      %p124 = scmp.ne.s32.totalorder %s115, %s116
      %p125 = scmp.eq.s32.totalorder %s30, 0
      %p126 = por %p124, %p125
      %p127 = scmp.ne.s32.totalorder %s115, %s116
      %p128 = scmp.eq.s32.totalorder %s31, 1
      %p129 = por %p127, %p128
      %p131 = scmp.ne.s32.totalorder %s116, %s130
      %p132 = scmp.eq.s32.totalorder %s31, 0
      %p133 = por %p131, %p132
      %s135 = sadd.s32 %s134, 1
      %p138 = scmp.eq.s32.totalorder %s25, 1
      %p139 = scmp.ne.s32.totalorder %s134, %s136
      %p140 = scmp.eq.s32.totalorder %s25, 0
      %p141 = por %p139, %p140
      %p142 = scmp.ne.s32.totalorder %s134, %s136
      %p143 = scmp.eq.s32.totalorder %s30, 1
      %p144 = por %p142, %p143
      %p145 = scmp.ne.s32.totalorder %s136, %s137
      %p146 = scmp.eq.s32.totalorder %s30, 0
      %p147 = por %p145, %p146
      %p148 = scmp.ne.s32.totalorder %s136, %s137
      %p149 = scmp.eq.s32.totalorder %s31, 1
      %p150 = por %p148, %p149
      %p152 = scmp.ne.s32.totalorder %s137, %s151
      %p153 = scmp.eq.s32.totalorder %s31, 0
      %p154 = por %p152, %p153
      %s156 = sadd.s32 %s155, 1
      %p159 = scmp.eq.s32.totalorder %s25, 1
      %p160 = scmp.ne.s32.totalorder %s155, %s157
      %p161 = scmp.eq.s32.totalorder %s25, 0
      %p162 = por %p160, %p161
      %p163 = scmp.ne.s32.totalorder %s155, %s157
      %p164 = scmp.eq.s32.totalorder %s30, 1
      %p165 = por %p163, %p164
      %p166 = scmp.ne.s32.totalorder %s157, %s158
      %p167 = scmp.eq.s32.totalorder %s30, 0
      %p168 = por %p166, %p167
      %p169 = scmp.ne.s32.totalorder %s157, %s158
      %p170 = scmp.eq.s32.totalorder %s31, 1
      %p171 = por %p169, %p170
      %p173 = scmp.ne.s32.totalorder %s158, %s172
      %p174 = scmp.eq.s32.totalorder %s31, 0
      %p175 = por %p173, %p174
      %s177 = sadd.s32 %s176, 1
      %p180 = scmp.eq.s32.totalorder %s25, 1
      %p181 = scmp.ne.s32.totalorder %s176, %s178
      %p182 = scmp.eq.s32.totalorder %s25, 0
      %p183 = por %p181, %p182
      %p184 = scmp.ne.s32.totalorder %s176, %s178
      %p185 = scmp.eq.s32.totalorder %s30, 1
      %p186 = por %p184, %p185
      %p187 = scmp.ne.s32.totalorder %s178, %s179
      %p188 = scmp.eq.s32.totalorder %s30, 0
      %p189 = por %p187, %p188
      %p190 = scmp.ne.s32.totalorder %s178, %s179
      %p191 = scmp.eq.s32.totalorder %s31, 1
      %p192 = por %p190, %p191
      %p194 = scmp.ne.s32.totalorder %s179, %s193
      %p195 = scmp.eq.s32.totalorder %s31, 0
      %p196 = por %p194, %p195
      %s198 = sadd.s32 %s197, 1
      %p201 = scmp.eq.s32.totalorder %s25, 1
      %p202 = scmp.ne.s32.totalorder %s197, %s199
      %p203 = scmp.eq.s32.totalorder %s25, 0
      %p204 = por %p202, %p203
      %p205 = scmp.ne.s32.totalorder %s197, %s199
      %p206 = scmp.eq.s32.totalorder %s30, 1
      %p207 = por %p205, %p206
      %p208 = scmp.ne.s32.totalorder %s199, %s200
      %p209 = scmp.eq.s32.totalorder %s30, 0
      %p210 = por %p208, %p209
      %p211 = scmp.ne.s32.totalorder %s199, %s200
      %p212 = scmp.eq.s32.totalorder %s31, 1
      %p213 = por %p211, %p212
      %p215 = scmp.ne.s32.totalorder %s200, %s214
      %p216 = scmp.eq.s32.totalorder %s31, 0
      %p217 = por %p215, %p216
      %s219 = sadd.s32 %s218, 1
      %p222 = scmp.eq.s32.totalorder %s25, 1
      %p223 = scmp.ne.s32.totalorder %s218, %s220
      %p224 = scmp.eq.s32.totalorder %s25, 0
      %p225 = por %p223, %p224
      %p226 = scmp.ne.s32.totalorder %s218, %s220
      %p227 = scmp.eq.s32.totalorder %s30, 1
      %p228 = por %p226, %p227
      %p229 = scmp.ne.s32.totalorder %s220, %s221
      %p230 = scmp.eq.s32.totalorder %s30, 0
      %p231 = por %p229, %p230
      %p232 = scmp.ne.s32.totalorder %s220, %s221
      %p233 = scmp.eq.s32.totalorder %s31, 1
      %p234 = por %p232, %p233
      %p236 = scmp.ne.s32.totalorder %s221, %s235
      %p237 = scmp.eq.s32.totalorder %s31, 0
      %p238 = por %p236, %p237
      %s240 = sadd.s32 %s239, 1
      %p243 = scmp.eq.s32.totalorder %s25, 1
      %p244 = scmp.ne.s32.totalorder %s239, %s241
      %p245 = scmp.eq.s32.totalorder %s25, 0
      %p246 = por %p244, %p245
      %p247 = scmp.ne.s32.totalorder %s239, %s241
      %p248 = scmp.eq.s32.totalorder %s30, 1
      %p249 = por %p247, %p248
      %p250 = scmp.ne.s32.totalorder %s241, %s242
      %p251 = scmp.eq.s32.totalorder %s30, 0
      %p252 = por %p250, %p251
      %p253 = scmp.ne.s32.totalorder %s241, %s242
      %p254 = scmp.eq.s32.totalorder %s31, 1
      %p255 = por %p253, %p254
      %p257 = scmp.ne.s32.totalorder %s242, %s256
      %p258 = scmp.eq.s32.totalorder %s31, 0
      %p259 = por %p257, %p258
      %s261 = sadd.s32 %s260, 1
      %p264 = scmp.eq.s32.totalorder %s25, 1
      %p265 = scmp.ne.s32.totalorder %s260, %s262
      %p266 = scmp.eq.s32.totalorder %s25, 0
      %p267 = por %p265, %p266
      %p268 = scmp.ne.s32.totalorder %s260, %s262
      %p269 = scmp.eq.s32.totalorder %s30, 1
      %p270 = por %p268, %p269
      %p271 = scmp.ne.s32.totalorder %s262, %s263
      %p272 = scmp.eq.s32.totalorder %s30, 0
      %p273 = por %p271, %p272
      %p274 = scmp.ne.s32.totalorder %s262, %s263
      %p275 = scmp.eq.s32.totalorder %s31, 1
      %p276 = por %p274, %p275
      %p278 = scmp.ne.s32.totalorder %s263, %s277
      %p279 = scmp.eq.s32.totalorder %s31, 0
      %p280 = por %p278, %p279
      %s282 = sadd.s32 %s281, 1
      %p285 = scmp.eq.s32.totalorder %s25, 1
      %p286 = scmp.ne.s32.totalorder %s281, %s283
      %p287 = scmp.eq.s32.totalorder %s25, 0
      %p288 = por %p286, %p287
      %p289 = scmp.ne.s32.totalorder %s281, %s283
      %p290 = scmp.eq.s32.totalorder %s30, 1
      %p291 = por %p289, %p290
      %p292 = scmp.ne.s32.totalorder %s283, %s284
      %p293 = scmp.eq.s32.totalorder %s30, 0
      %p294 = por %p292, %p293
      %p295 = scmp.ne.s32.totalorder %s283, %s284
      %p296 = scmp.eq.s32.totalorder %s31, 1
      %p297 = por %p295, %p296
      %p299 = scmp.ne.s32.totalorder %s284, %s298
      %p300 = scmp.eq.s32.totalorder %s31, 0
      %p301 = por %p299, %p300
      %s303 = sadd.s32 %s302, 1
      %p306 = scmp.eq.s32.totalorder %s25, 1
      %p307 = scmp.ne.s32.totalorder %s302, %s304
      %p308 = scmp.eq.s32.totalorder %s25, 0
      %p309 = por %p307, %p308
      %p310 = scmp.ne.s32.totalorder %s302, %s304
      %p311 = scmp.eq.s32.totalorder %s30, 1
      %p312 = por %p310, %p311
      %p313 = scmp.ne.s32.totalorder %s304, %s305
      %p314 = scmp.eq.s32.totalorder %s30, 0
      %p315 = por %p313, %p314
      %p316 = scmp.ne.s32.totalorder %s304, %s305
      %p317 = scmp.eq.s32.totalorder %s31, 1
      %p318 = por %p316, %p317
      %p320 = scmp.ne.s32.totalorder %s305, %s319
      %p321 = scmp.eq.s32.totalorder %s31, 0
      %p322 = por %p320, %p321
      %s323 = ssub.s32 %s32, %s44
      %s324 = ssub.s32 %s33, %s40
      %s325 = sor.u32 %s323, %s324
      %p326 = scmp.eq.s32.totalorder %s325, 0
      %s328 = sadd.s32 %s327, 1
      %s329 = scalar_select %p326, %s327, %s328
      %p332 = pneg %p326
      %p333 = scmp.eq.s32.totalorder %s25, 1
      %p334 = por %p332, %p333
      %p335 = scmp.ne.s32.totalorder %s327, %s330
      %p336 = scmp.eq.s32.totalorder %s25, 0
      %p337 = por %p335, %p336
      %p338 = scmp.ne.s32.totalorder %s327, %s330
      %p339 = scmp.eq.s32.totalorder %s30, 1
      %p340 = por %p338, %p339
      %p341 = scmp.ne.s32.totalorder %s330, %s331
      %p342 = scmp.eq.s32.totalorder %s30, 0
      %p343 = por %p341, %p342
      %p344 = scmp.ne.s32.totalorder %s330, %s331
      %p345 = scmp.eq.s32.totalorder %s31, 1
      %p346 = por %p344, %p345
      %p348 = scmp.ne.s32.totalorder %s331, %s347
      %p349 = scmp.eq.s32.totalorder %s31, 0
      %p350 = por %p348, %p349
      %p351 = scmp.le.s32.totalorder 1, %s25
      %p352 = scmp.lt.s32.totalorder %s25, 3
      %p353 = pnand %p351, %p352
      %p354 = pneg %p353
      // Predicated region
      $region9: #{tpu_custom_call.1} parent=5 // pred_check
        _
      $region10: #{tpu_custom_call.1} parent=5 // pred_check_branch
        %356 = sbr.rel (%p353) target = $region12
      $region11: #{tpu_custom_call.1} parent=5 // pred_region
        %s357 = ssub.s32 %s25, 1
        // Predicated region
        $region13: #{tpu_custom_call.1} parent=11 // pred_check
          %p358 = pneg %p84
        $region14: #{tpu_custom_call.1} parent=11 // pred_check_branch
          %360 = sbr.rel (%p358) target = $region16
        $region15: #{tpu_custom_call.1} parent=11 // pred_region
          _
        $region16: #{tpu_custom_call.1} parent=11 // pred_fallthru
          _
        // Predicated region
        $region17: #{tpu_custom_call.1} parent=11 // pred_check
          %p361 = pneg %p105
        $region18: #{tpu_custom_call.1} parent=11 // pred_check_branch
          %363 = sbr.rel (%p361) target = $region20
        $region19: #{tpu_custom_call.1} parent=11 // pred_region
          _
        $region20: #{tpu_custom_call.1} parent=11 // pred_fallthru
          _
        // Predicated region
        $region21: #{tpu_custom_call.1} parent=11 // pred_check
          %p364 = pneg %p126
        $region22: #{tpu_custom_call.1} parent=11 // pred_check_branch
          %366 = sbr.rel (%p364) target = $region24
        $region23: #{tpu_custom_call.1} parent=11 // pred_region
          _
        $region24: #{tpu_custom_call.1} parent=11 // pred_fallthru
          _
        // Predicated region
        $region25: #{tpu_custom_call.1} parent=11 // pred_check
          %p367 = pneg %p147
        $region26: #{tpu_custom_call.1} parent=11 // pred_check_branch
          %369 = sbr.rel (%p367) target = $region28
        $region27: #{tpu_custom_call.1} parent=11 // pred_region
          _
        $region28: #{tpu_custom_call.1} parent=11 // pred_fallthru
          _
        // Predicated region
        $region29: #{tpu_custom_call.1} parent=11 // pred_check
          %p370 = pneg %p168
        $region30: #{tpu_custom_call.1} parent=11 // pred_check_branch
          %372 = sbr.rel (%p370) target = $region32
        $region31: #{tpu_custom_call.1} parent=11 // pred_region
          _
        $region32: #{tpu_custom_call.1} parent=11 // pred_fallthru
          _
        // Predicated region
        $region33: #{tpu_custom_call.1} parent=11 // pred_check
          %p373 = pneg %p189
        $region34: #{tpu_custom_call.1} parent=11 // pred_check_branch
          %375 = sbr.rel (%p373) target = $region36
        $region35: #{tpu_custom_call.1} parent=11 // pred_region
          _
        $region36: #{tpu_custom_call.1} parent=11 // pred_fallthru
          _
        // Predicated region
        $region37: #{tpu_custom_call.1} parent=11 // pred_check
          %p376 = pneg %p210
        $region38: #{tpu_custom_call.1} parent=11 // pred_check_branch
          %378 = sbr.rel (%p376) target = $region40
        $region39: #{tpu_custom_call.1} parent=11 // pred_region
          _
        $region40: #{tpu_custom_call.1} parent=11 // pred_fallthru
          _
        // Predicated region
        $region41: #{tpu_custom_call.1} parent=11 // pred_check
          %p379 = pneg %p231
        $region42: #{tpu_custom_call.1} parent=11 // pred_check_branch
          %381 = sbr.rel (%p379) target = $region44
        $region43: #{tpu_custom_call.1} parent=11 // pred_region
          _
        $region44: #{tpu_custom_call.1} parent=11 // pred_fallthru
          _
        // Predicated region
        $region45: #{tpu_custom_call.1} parent=11 // pred_check
          %p382 = pneg %p252
        $region46: #{tpu_custom_call.1} parent=11 // pred_check_branch
          %384 = sbr.rel (%p382) target = $region48
        $region47: #{tpu_custom_call.1} parent=11 // pred_region
          _
        $region48: #{tpu_custom_call.1} parent=11 // pred_fallthru
          _
        // Predicated region
        $region49: #{tpu_custom_call.1} parent=11 // pred_check
          %p385 = pneg %p273
        $region50: #{tpu_custom_call.1} parent=11 // pred_check_branch
          %387 = sbr.rel (%p385) target = $region52
        $region51: #{tpu_custom_call.1} parent=11 // pred_region
          _
        $region52: #{tpu_custom_call.1} parent=11 // pred_fallthru
          _
        // Predicated region
        $region53: #{tpu_custom_call.1} parent=11 // pred_check
          %p388 = pneg %p294
        $region54: #{tpu_custom_call.1} parent=11 // pred_check_branch
          %390 = sbr.rel (%p388) target = $region56
        $region55: #{tpu_custom_call.1} parent=11 // pred_region
          _
        $region56: #{tpu_custom_call.1} parent=11 // pred_fallthru
          _
        // Predicated region
        $region57: #{tpu_custom_call.1} parent=11 // pred_check
          %p391 = pneg %p315
        $region58: #{tpu_custom_call.1} parent=11 // pred_check_branch
          %393 = sbr.rel (%p391) target = $region60
        $region59: #{tpu_custom_call.1} parent=11 // pred_region
          _
        $region60: #{tpu_custom_call.1} parent=11 // pred_fallthru
          _
      $region12: #{tpu_custom_call.1} parent=5 // pred_fallthru
        _
      %p394 = scmp.lt.s32.totalorder %s25, 2
      // Predicated region
      $region61: #{tpu_custom_call.1} parent=5 // pred_check
        %p395 = pneg %p394
      $region62: #{tpu_custom_call.1} parent=5 // pred_check_branch
        %397 = sbr.rel (%p395) target = $region64
      $region63: #{tpu_custom_call.1} parent=5 // pred_region
        // Predicated region
        $region65: #{tpu_custom_call.1} parent=63 // pred_check
          %p398 = pneg %p57
        $region66: #{tpu_custom_call.1} parent=63 // pred_check_branch
          %400 = sbr.rel (%p398) target = $region68
        $region67: #{tpu_custom_call.1} parent=63 // pred_region
          %s401 = sand.u32 %s47, 1
          %s402 = scalar_lea.sflag [#allocation6], %s401
          %s403 = sand.u32 %s47, 1
          %s404 = smul.addr %s403, 4
          %s405 = scalar_lea.vmem [#allocation5], %s404
          %s407 = ssub.s32 64, 64
          %408 = vsyncadd %s402, %s407
          %s409 = smul.addr %s32, 64
          %s410 = scalar_lea.hbm %s0, %s409
          %s412 = sshll.u32 %s405, 4
          %s413 = int_to_ptr.vmem [resolvable:$true] %s412
          %415 = dma.hbm_to_vmem [thread:$0]  %s410, 64, %s413, %s402
        $region68: #{tpu_custom_call.1} parent=63 // pred_fallthru
          _
      $region64: #{tpu_custom_call.1} parent=5 // pred_fallthru
        _
      %p416 = scmp.le.s32.totalorder 1, %s25
      %p417 = scmp.lt.s32.totalorder %s25, 3
      %p418 = pnand %p416, %p417
      %p419 = pneg %p418
      // Predicated region
      $region69: #{tpu_custom_call.1} parent=5 // pred_check
        _
      $region70: #{tpu_custom_call.1} parent=5 // pred_check_branch
        %421 = sbr.rel (%p418) target = $region72
      $region71: #{tpu_custom_call.1} parent=5 // pred_region
        %s422 = ssub.s32 %s25, 1
        %s423 = sand.u32 %s50, 1
        %s424 = scalar_lea.sflag [#allocation6], %s423
        %s425 = sand.u32 %s50, 1
        %s426 = smul.addr %s425, 4
        %s427 = scalar_lea.vmem [#allocation5], %s426
        // Predicated region
        $region73: #{tpu_custom_call.1} parent=71 // pred_check
          %p428 = pneg %p63
        $region74: #{tpu_custom_call.1} parent=71 // pred_check_branch
          %430 = sbr.rel (%p428) target = $region76
        $region75: #{tpu_custom_call.1} parent=71 // pred_region
          %431 = dma.done %s424, 64
        $region76: #{tpu_custom_call.1} parent=71 // pred_fallthru
          _
        %s432 = sand.u32 %s50, 1
        %s433 = scalar_lea.sflag [#allocation6], %s432
        %s434 = sand.u32 %s50, 1
        %s435 = smul.addr %s434, 4
        %s436 = scalar_lea.vmem [#allocation5], %s435
        %p437 = pneg %p63
        %p438 = pneg %p60
        %p439 = pneg %p84
        %p440 = pneg %p81
        %p441 = pneg %p105
        %p442 = pneg %p102
        %p443 = pneg %p126
        %p444 = pneg %p123
        %p445 = pneg %p147
        %p446 = pneg %p144
        %p447 = pneg %p168
        %p448 = pneg %p165
        %p449 = pneg %p189
        %p450 = pneg %p186
        %p451 = pneg %p210
        %p452 = pneg %p207
        %p453 = pneg %p231
        %p454 = pneg %p228
        %p455 = pneg %p252
        %p456 = pneg %p249
        %p457 = pneg %p273
        %p458 = pneg %p270
        %p459 = pneg %p294
        %p460 = pneg %p291
        %p461 = pneg %p315
        %p462 = pneg %p312
        %p463 = pneg %p343
        %p464 = pneg %p340
        %s465 = sand.u32 %s330, 1
        %s466 = scalar_lea.sflag [#allocation7], %s465
        %s467 = sand.u32 %s330, 1
        %s468 = smul.addr %s467, 8
        %s469 = scalar_lea.vmem [#allocation8], %s468
        %p471 = scmp.eq.s32.totalorder %s35, 0
        // Predicated region
        $region77: #{tpu_custom_call.1} parent=71 // pred_check
          %p472 = pneg %p471
        $region78: #{tpu_custom_call.1} parent=71 // pred_check_branch
          %474 = sbr.rel (%p472) target = $region80
        $region79: #{tpu_custom_call.1} parent=71 // pred_region
          %v475 = vld [vmem:[%s427] sm:$0xf]
          %v476 = vld [vmem:[%s1] sm:$0xf]
          %v477 = vld [vmem:[%s1 + $0x4] sm:$0xf]
          %v478 = vld [vmem:[%s1 + $0x8] sm:$0xf]
          %v479 = vld [vmem:[%s1 + $0xc] sm:$0xf]
          %v480 = vld [vmem:[%s2] sm:$0x1]
          %v482 = vlaneseq
          %v483 = vshrl.u32 %v482, 7
          %v484 = vsub.s32 0, %v483
          %v485 = vrot.slane %v480, %v484
          %v491 = vunpack.c.l.b16 %v476
          %v492 = vunpack.c.l.b16 %v477
          %v493 = vunpack.c.l.b16 %v478
          %v494 = vunpack.c.l.b16 %v479
          %v495 = vpack.c.b16 %v492, %v491
          %v496 = vpack.c.b16 %v494, %v493
          %vm499 = vcmask 261120
          %v501 = vsel %vm499, %v475, 0
          %503 = vmatprep.subr.bf16.mxu0 0
          %504 = vmatpush1.bf16.msra.mxu0 %v495
          %505 = vmatprep.subr.bf16.mxu0 0
          %506 = vmatpush1.bf16.msra.mxu0 %v496
          %507 = vmatprep.subr.bf16.mxu0 0
          %508 = vmatpush1.bf16.msra.mxu0 0
          %509 = vmatprep.subr.bf16.mxu0 0
          %510 = vmatpush1.bf16.msra.mxu0 0
          %511 = vmatprep.subr.bf16.mxu0 0
          %512 = vmatpush1.bf16.msra.mxu0 0
          %513 = vmatprep.subr.bf16.mxu0 0
          %514 = vmatpush1.bf16.msra.mxu0 0
          %515 = vmatprep.subr.bf16.mxu0 0
          %516 = vmatpush1.bf16.msra.mxu0 0
          %517 = vmatprep.subr.bf16.mxu0 0
          %518 = vmatpush1.bf16.msra.mxu0 0
          %519 = vmatprep.subr.bf16.mxu0 0
          %520 = vmatpush1.bf16.msra.mxu0 0
          %521 = vmatprep.subr.bf16.mxu0 0
          %522 = vmatpush1.bf16.msra.mxu0 0
          %523 = vmatprep.subr.bf16.mxu0 0
          %524 = vmatpush1.bf16.msra.mxu0 0
          %525 = vmatprep.subr.bf16.mxu0 0
          %526 = vmatpush1.bf16.msra.mxu0 0
          %527 = vmatprep.subr.bf16.mxu0 0
          %528 = vmatpush1.bf16.msra.mxu0 0
          %529 = vmatprep.subr.bf16.mxu0 0
          %530 = vmatpush1.bf16.msra.mxu0 0
          %531 = vmatprep.subr.bf16.mxu0 0
          %532 = vmatpush1.bf16.msra.mxu0 0
          %533 = vmatprep.subr.bf16.mxu0 0
          %534 = vmatpush1.bf16.msra.mxu0 0
          %535 = vmatprep.mubr.bf16.mxu0 0
          %536 = vmatmul.mubr.bf16.gmra.mrb[0].mxu0 %v501
          %v537 = vpop.f32.mrb[0].mxu0
          %v538 = vadd.f32 %v485, %v537
          %v539 = vpop.f32.mrb[0].mxu0
          %v540 = vpop.f32.mrb[0].mxu0
          %v541 = vpop.f32.mrb[0].mxu0
          %542 = vdwg.mxu0
          %v543 = vmul.f32 %v538, 0.35355338
          %v544 = vpack.c.bf16 %v543, %v543
          %vm545 = vcmask 60416
          %546 = vst.msk [vmem:[#allocation2] sm:$0xf] %vm545, %v544
          %v547 = vpack.c.bf16 %v538, %v538
          %549 = vrot.lane.b32.xlu0 %v547, 96
          %v550 = vpop.permute.xlu0 %549
          %552 = vxpose.xlu0.c.b16.start [1/8] %v550, 128
          %553 = vxpose.xlu0.c.b16.cont [2/8] 0, 128
          %554 = vxpose.xlu0.c.b16.cont [3/8] 0, 128
          %555 = vxpose.xlu0.c.b16.cont [4/8] 0, 128
          %556 = vxpose.xlu0.c.b16.cont [5/8] 0, 128
          %557 = vxpose.xlu0.c.b16.cont [6/8] 0, 128
          %558 = vxpose.xlu0.c.b16.cont [7/8] 0, 128
          %559 = vxpose.xlu0.c.b16.end [8/8] 0, 128
          %v560 = vpop.trf.xlu0
          %v561 = vpop.trf.xlu0
          %v562 = vpop.trf.xlu0
          %v563 = vpop.trf.xlu0
          %v564 = vpop.trf.xlu0
          %v565 = vpop.trf.xlu0
          %v566 = vpop.trf.xlu0
          %v567 = vpop.trf.xlu0
          %568 = vst.msk [vmem:[#allocation3] sm:$0xf] %vm545, %v560
          %v569 = vunpack.c.l.b16 %v547
          %v570 = vpack.c.b16 %v569, %v569
          %571 = vrot.lane.b32.xlu0 %v570, 64
          %v572 = vpop.permute.xlu0 %571
          %574 = vst.msk [vmem:[#allocation4] sm:$0xf] %vm545, %v572
          %v576 = vunpack.c.l.b16 %v544
          %v577 = vpack.c.b16 %v576, %v576
          %578 = vrot.lane.b32.xlu0 %v577, 120
          %v579 = vpop.permute.xlu0 %578
          %s581 = scalar_lea.vmem [#allocation2], 4
          %582 = vst.msk [vmem:[%s581] sm:$0xf] %vm545, %v579
          %583 = vrot.lane.b32.xlu0 %v547, 88
          %v584 = vpop.permute.xlu0 %583
          %586 = vxpose.xlu0.c.b16.start [1/8] %v584, 128
          %587 = vxpose.xlu0.c.b16.cont [2/8] 0, 128
          %588 = vxpose.xlu0.c.b16.cont [3/8] 0, 128
          %589 = vxpose.xlu0.c.b16.cont [4/8] 0, 128
          %590 = vxpose.xlu0.c.b16.cont [5/8] 0, 128
          %591 = vxpose.xlu0.c.b16.cont [6/8] 0, 128
          %592 = vxpose.xlu0.c.b16.cont [7/8] 0, 128
          %593 = vxpose.xlu0.c.b16.end [8/8] 0, 128
          %v594 = vpop.trf.xlu0
          %v595 = vpop.trf.xlu0
          %v596 = vpop.trf.xlu0
          %v597 = vpop.trf.xlu0
          %v598 = vpop.trf.xlu0
          %v599 = vpop.trf.xlu0
          %v600 = vpop.trf.xlu0
          %v601 = vpop.trf.xlu0
          %s602 = scalar_lea.vmem [#allocation3], 4
          %603 = vst.msk [vmem:[%s602] sm:$0xf] %vm545, %v594
          %604 = vrot.lane.b32.xlu0 %v570, 56
          %v605 = vpop.permute.xlu0 %604
          %s607 = scalar_lea.vmem [#allocation4], 4
          %608 = vst.msk [vmem:[%s607] sm:$0xf] %vm545, %v605
          %609 = vrot.lane.b32.xlu0 %v577, 112
          %v610 = vpop.permute.xlu0 %609
          %s612 = scalar_lea.vmem [#allocation2], 8
          %613 = vst.msk [vmem:[%s612] sm:$0xf] %vm545, %v610
          %614 = vrot.lane.b32.xlu0 %v547, 80
          %v615 = vpop.permute.xlu0 %614
          %617 = vxpose.xlu0.c.b16.start [1/8] %v615, 128
          %618 = vxpose.xlu0.c.b16.cont [2/8] 0, 128
          %619 = vxpose.xlu0.c.b16.cont [3/8] 0, 128
          %620 = vxpose.xlu0.c.b16.cont [4/8] 0, 128
          %621 = vxpose.xlu0.c.b16.cont [5/8] 0, 128
          %622 = vxpose.xlu0.c.b16.cont [6/8] 0, 128
          %623 = vxpose.xlu0.c.b16.cont [7/8] 0, 128
          %624 = vxpose.xlu0.c.b16.end [8/8] 0, 128
          %v625 = vpop.trf.xlu0
          %v626 = vpop.trf.xlu0
          %v627 = vpop.trf.xlu0
          %v628 = vpop.trf.xlu0
          %v629 = vpop.trf.xlu0
          %v630 = vpop.trf.xlu0
          %v631 = vpop.trf.xlu0
          %v632 = vpop.trf.xlu0
          %s633 = scalar_lea.vmem [#allocation3], 8
          %634 = vst.msk [vmem:[%s633] sm:$0xf] %vm545, %v625
          %635 = vrot.lane.b32.xlu0 %v570, 48
          %v636 = vpop.permute.xlu0 %635
          %s638 = scalar_lea.vmem [#allocation4], 8
          %639 = vst.msk [vmem:[%s638] sm:$0xf] %vm545, %v636
          %640 = vrot.lane.b32.xlu0 %v577, 104
          %v641 = vpop.permute.xlu0 %640
          %s643 = scalar_lea.vmem [#allocation2], 12
          %644 = vst.msk [vmem:[%s643] sm:$0xf] %vm545, %v641
          %645 = vrot.lane.b32.xlu0 %v547, 72
          %v646 = vpop.permute.xlu0 %645
          %648 = vxpose.xlu0.c.b16.start [1/8] %v646, 128
          %649 = vxpose.xlu0.c.b16.cont [2/8] 0, 128
          %650 = vxpose.xlu0.c.b16.cont [3/8] 0, 128
          %651 = vxpose.xlu0.c.b16.cont [4/8] 0, 128
          %652 = vxpose.xlu0.c.b16.cont [5/8] 0, 128
          %653 = vxpose.xlu0.c.b16.cont [6/8] 0, 128
          %654 = vxpose.xlu0.c.b16.cont [7/8] 0, 128
          %655 = vxpose.xlu0.c.b16.end [8/8] 0, 128
          %v656 = vpop.trf.xlu0
          %v657 = vpop.trf.xlu0
          %v658 = vpop.trf.xlu0
          %v659 = vpop.trf.xlu0
          %v660 = vpop.trf.xlu0
          %v661 = vpop.trf.xlu0
          %v662 = vpop.trf.xlu0
          %v663 = vpop.trf.xlu0
          %s664 = scalar_lea.vmem [#allocation3], 12
          %665 = vst.msk [vmem:[%s664] sm:$0xf] %vm545, %v656
          %666 = vrot.lane.b32.xlu0 %v570, 40
          %v667 = vpop.permute.xlu0 %666
          %s669 = scalar_lea.vmem [#allocation4], 12
          %670 = vst.msk [vmem:[%s669] sm:$0xf] %vm545, %v667
        $region80: #{tpu_custom_call.1} parent=71 // pred_fallthru
          _
        %s671 = smul.u32 %s35, 8
        %s672 = sshra.s32 %s671, 3
        %s673 = sand.u32 %s671, 7
        %s674 = smul.addr %s672, 4
        %s675 = scalar_lea.vmem %s427, %s674 [#allocation5]
        %v676 = vld [vmem:[%s675] sm:$0xf]
        %v677 = vunpack.c.l.bf16 %v676
        %s678 = smul.addr %s672, 4
        %s679 = scalar_lea.vmem [#allocation2], %s678
        %v680 = vld [vmem:[%s679] sm:$0xf]
        %v681 = vld [vmem:[%s679 + $0x4] sm:$0xf]
        %v682 = vld [vmem:[%s679 + $0x8] sm:$0xf]
        %v683 = vld [vmem:[%s679 + $0xc] sm:$0xf]
        %v684 = vld [vmem:[#allocation3] sm:$0xf]
        %v685 = vld [vmem:[#allocation3 + $0x4] sm:$0xf]
        %v686 = vld [vmem:[#allocation3 + $0x8] sm:$0xf]
        %v687 = vld [vmem:[#allocation3 + $0xc] sm:$0xf]
        %v688 = vld [vmem:[#allocation4] sm:$0xf]
        %v689 = vld [vmem:[#allocation4 + $0x4] sm:$0xf]
        %v690 = vld [vmem:[#allocation4 + $0x8] sm:$0xf]
        %v691 = vld [vmem:[#allocation4 + $0xc] sm:$0xf]
        %vm692 = vcmask 64512
        %v694 = vsel %vm692, %v680, 0
        %vm696 = vcmask 1043456
        %v698 = vsel %vm696, %v684, 0
        %700 = vmatprep.subr.bf16.mxu0 0
        %701 = vmatpush1.bf16.msra.mxu0 %v698
        %702 = vmatprep.subr.bf16.mxu0 0
        %703 = vmatpush1.bf16.msra.mxu0 0
        %704 = vmatprep.subr.bf16.mxu0 0
        %705 = vmatpush1.bf16.msra.mxu0 0
        %706 = vmatprep.subr.bf16.mxu0 0
        %707 = vmatpush1.bf16.msra.mxu0 0
        %708 = vmatprep.subr.bf16.mxu0 0
        %709 = vmatpush1.bf16.msra.mxu0 0
        %710 = vmatprep.subr.bf16.mxu0 0
        %711 = vmatpush1.bf16.msra.mxu0 0
        %712 = vmatprep.subr.bf16.mxu0 0
        %713 = vmatpush1.bf16.msra.mxu0 0
        %714 = vmatprep.subr.bf16.mxu0 0
        %715 = vmatpush1.bf16.msra.mxu0 0
        %716 = vmatprep.subr.bf16.mxu0 0
        %717 = vmatpush1.bf16.msra.mxu0 0
        %718 = vmatprep.subr.bf16.mxu0 0
        %719 = vmatpush1.bf16.msra.mxu0 0
        %720 = vmatprep.subr.bf16.mxu0 0
        %721 = vmatpush1.bf16.msra.mxu0 0
        %722 = vmatprep.subr.bf16.mxu0 0
        %723 = vmatpush1.bf16.msra.mxu0 0
        %724 = vmatprep.subr.bf16.mxu0 0
        %725 = vmatpush1.bf16.msra.mxu0 0
        %726 = vmatprep.subr.bf16.mxu0 0
        %727 = vmatpush1.bf16.msra.mxu0 0
        %728 = vmatprep.subr.bf16.mxu0 0
        %729 = vmatpush1.bf16.msra.mxu0 0
        %730 = vmatprep.subr.bf16.mxu0 0
        %731 = vmatpush1.bf16.msra.mxu0 0
        %732 = vmatprep.mubr.bf16.mxu0 0
        %733 = vmatmul.mubr.bf16.gmra.mrb[0].mxu0 %v694
        %v734 = vpop.f32.mrb[0].mxu0
        %v735 = vadd.f32 0.0, %v734
        %v736 = vpop.f32.mrb[0].mxu0
        %v737 = vpop.f32.mrb[0].mxu0
        %v738 = vpop.f32.mrb[0].mxu0
        %739 = vdwg.mxu0
        %v741 = vsel %vm692, %v681, 0
        %v744 = vsel %vm696, %v685, 0
        %746 = vmatprep.subr.bf16.mxu0 0
        %747 = vmatpush1.bf16.msra.mxu0 %v744
        %748 = vmatprep.subr.bf16.mxu0 0
        %749 = vmatpush1.bf16.msra.mxu0 0
        %750 = vmatprep.subr.bf16.mxu0 0
        %751 = vmatpush1.bf16.msra.mxu0 0
        %752 = vmatprep.subr.bf16.mxu0 0
        %753 = vmatpush1.bf16.msra.mxu0 0
        %754 = vmatprep.subr.bf16.mxu0 0
        %755 = vmatpush1.bf16.msra.mxu0 0
        %756 = vmatprep.subr.bf16.mxu0 0
        %757 = vmatpush1.bf16.msra.mxu0 0
        %758 = vmatprep.subr.bf16.mxu0 0
        %759 = vmatpush1.bf16.msra.mxu0 0
        %760 = vmatprep.subr.bf16.mxu0 0
        %761 = vmatpush1.bf16.msra.mxu0 0
        %762 = vmatprep.subr.bf16.mxu0 0
        %763 = vmatpush1.bf16.msra.mxu0 0
        %764 = vmatprep.subr.bf16.mxu0 0
        %765 = vmatpush1.bf16.msra.mxu0 0
        %766 = vmatprep.subr.bf16.mxu0 0
        %767 = vmatpush1.bf16.msra.mxu0 0
        %768 = vmatprep.subr.bf16.mxu0 0
        %769 = vmatpush1.bf16.msra.mxu0 0
        %770 = vmatprep.subr.bf16.mxu0 0
        %771 = vmatpush1.bf16.msra.mxu0 0
        %772 = vmatprep.subr.bf16.mxu0 0
        %773 = vmatpush1.bf16.msra.mxu0 0
        %774 = vmatprep.subr.bf16.mxu0 0
        %775 = vmatpush1.bf16.msra.mxu0 0
        %776 = vmatprep.subr.bf16.mxu0 0
        %777 = vmatpush1.bf16.msra.mxu0 0
        %778 = vmatprep.mubr.bf16.mxu0 0
        %779 = vmatmul.mubr.bf16.gmra.mrb[0].mxu0 %v741
        %v780 = vpop.f32.mrb[0].mxu0
        %v781 = vadd.f32 0.0, %v780
        %v782 = vpop.f32.mrb[0].mxu0
        %v783 = vpop.f32.mrb[0].mxu0
        %v784 = vpop.f32.mrb[0].mxu0
        %785 = vdwg.mxu0
        %v787 = vsel %vm692, %v682, 0
        %v790 = vsel %vm696, %v686, 0
        %792 = vmatprep.subr.bf16.mxu0 0
        %793 = vmatpush1.bf16.msra.mxu0 %v790
        %794 = vmatprep.subr.bf16.mxu0 0
        %795 = vmatpush1.bf16.msra.mxu0 0
        %796 = vmatprep.subr.bf16.mxu0 0
        %797 = vmatpush1.bf16.msra.mxu0 0
        %798 = vmatprep.subr.bf16.mxu0 0
        %799 = vmatpush1.bf16.msra.mxu0 0
        %800 = vmatprep.subr.bf16.mxu0 0
        %801 = vmatpush1.bf16.msra.mxu0 0
        %802 = vmatprep.subr.bf16.mxu0 0
        %803 = vmatpush1.bf16.msra.mxu0 0
        %804 = vmatprep.subr.bf16.mxu0 0
        %805 = vmatpush1.bf16.msra.mxu0 0
        %806 = vmatprep.subr.bf16.mxu0 0
        %807 = vmatpush1.bf16.msra.mxu0 0
        %808 = vmatprep.subr.bf16.mxu0 0
        %809 = vmatpush1.bf16.msra.mxu0 0
        %810 = vmatprep.subr.bf16.mxu0 0
        %811 = vmatpush1.bf16.msra.mxu0 0
        %812 = vmatprep.subr.bf16.mxu0 0
        %813 = vmatpush1.bf16.msra.mxu0 0
        %814 = vmatprep.subr.bf16.mxu0 0
        %815 = vmatpush1.bf16.msra.mxu0 0
        %816 = vmatprep.subr.bf16.mxu0 0
        %817 = vmatpush1.bf16.msra.mxu0 0
        %818 = vmatprep.subr.bf16.mxu0 0
        %819 = vmatpush1.bf16.msra.mxu0 0
        %820 = vmatprep.subr.bf16.mxu0 0
        %821 = vmatpush1.bf16.msra.mxu0 0
        %822 = vmatprep.subr.bf16.mxu0 0
        %823 = vmatpush1.bf16.msra.mxu0 0
        %824 = vmatprep.mubr.bf16.mxu0 0
        %825 = vmatmul.mubr.bf16.gmra.mrb[0].mxu0 %v787
        %v826 = vpop.f32.mrb[0].mxu0
        %v827 = vadd.f32 0.0, %v826
        %v828 = vpop.f32.mrb[0].mxu0
        %v829 = vpop.f32.mrb[0].mxu0
        %v830 = vpop.f32.mrb[0].mxu0
        %831 = vdwg.mxu0
        %v833 = vsel %vm692, %v683, 0
        %v836 = vsel %vm696, %v687, 0
        %838 = vmatprep.subr.bf16.mxu0 0
        %839 = vmatpush1.bf16.msra.mxu0 %v836
        %840 = vmatprep.subr.bf16.mxu0 0
        %841 = vmatpush1.bf16.msra.mxu0 0
        %842 = vmatprep.subr.bf16.mxu0 0
        %843 = vmatpush1.bf16.msra.mxu0 0
        %844 = vmatprep.subr.bf16.mxu0 0
        %845 = vmatpush1.bf16.msra.mxu0 0
        %846 = vmatprep.subr.bf16.mxu0 0
        %847 = vmatpush1.bf16.msra.mxu0 0
        %848 = vmatprep.subr.bf16.mxu0 0
        %849 = vmatpush1.bf16.msra.mxu0 0
        %850 = vmatprep.subr.bf16.mxu0 0
        %851 = vmatpush1.bf16.msra.mxu0 0
        %852 = vmatprep.subr.bf16.mxu0 0
        %853 = vmatpush1.bf16.msra.mxu0 0
        %854 = vmatprep.subr.bf16.mxu0 0
        %855 = vmatpush1.bf16.msra.mxu0 0
        %856 = vmatprep.subr.bf16.mxu0 0
        %857 = vmatpush1.bf16.msra.mxu0 0
        %858 = vmatprep.subr.bf16.mxu0 0
        %859 = vmatpush1.bf16.msra.mxu0 0
        %860 = vmatprep.subr.bf16.mxu0 0
        %861 = vmatpush1.bf16.msra.mxu0 0
        %862 = vmatprep.subr.bf16.mxu0 0
        %863 = vmatpush1.bf16.msra.mxu0 0
        %864 = vmatprep.subr.bf16.mxu0 0
        %865 = vmatpush1.bf16.msra.mxu0 0
        %866 = vmatprep.subr.bf16.mxu0 0
        %867 = vmatpush1.bf16.msra.mxu0 0
        %868 = vmatprep.subr.bf16.mxu0 0
        %869 = vmatpush1.bf16.msra.mxu0 0
        %870 = vmatprep.mubr.bf16.mxu0 0
        %871 = vmatmul.mubr.bf16.gmra.mrb[0].mxu0 %v833
        %v872 = vpop.f32.mrb[0].mxu0
        %v873 = vadd.f32 0.0, %v872
        %v874 = vpop.f32.mrb[0].mxu0
        %v875 = vpop.f32.mrb[0].mxu0
        %v876 = vpop.f32.mrb[0].mxu0
        %877 = vdwg.mxu0
        %v878 = vsel %vm692, %v735, -inf
        %879 = vmax.xlane.f32.xlu0 %v878
        %v880 = vpop.xlane.xlu0 %879
        %v881 = vsel %vm692, %v781, -inf
        %882 = vmax.xlane.f32.xlu0 %v881
        %v883 = vpop.xlane.xlu0 %882
        %v884 = vsel %vm692, %v827, -inf
        %885 = vmax.xlane.f32.xlu0 %v884
        %v886 = vpop.xlane.xlu0 %885
        %v887 = vsel %vm692, %v873, -inf
        %888 = vmax.xlane.f32.xlu0 %v887
        %v889 = vpop.xlane.xlu0 %888
        %v890 = vsub.f32 %v735, %v880
        %v891 = vsub.f32 %v781, %v883
        %v892 = vsub.f32 %v827, %v886
        %v893 = vsub.f32 %v873, %v889
        %v894 = vmul.f32 %v890, 1.442695
        %v895 = vpow.pop %v894
        %v896 = vmul.f32 %v891, 1.442695
        %v897 = vpow.pop %v896
        %v898 = vmul.f32 %v892, 1.442695
        %v899 = vpow.pop %v898
        %v900 = vmul.f32 %v893, 1.442695
        %v901 = vpow.pop %v900
        %v902 = vsel %vm692, %v895, 0.0
        %903 = vadd.xlane.f32.xlu0 %v902
        %v904 = vpop.xlane.xlu0 %903
        %v905 = vsel %vm692, %v897, 0.0
        %906 = vadd.xlane.f32.xlu0 %v905
        %v907 = vpop.xlane.xlu0 %906
        %v908 = vsel %vm692, %v899, 0.0
        %909 = vadd.xlane.f32.xlu0 %v908
        %v910 = vpop.xlane.xlu0 %909
        %v911 = vsel %vm692, %v901, 0.0
        %912 = vadd.xlane.f32.xlu0 %v911
        %v913 = vpop.xlane.xlu0 %912
        %v914 = vpack.c.bf16 %v895, %v895
        %v915 = vpack.c.bf16 %v897, %v897
        %v916 = vpack.c.bf16 %v899, %v899
        %v917 = vpack.c.bf16 %v901, %v901
        %v919 = vsel %vm692, %v914, 0
        %v922 = vsel %vm696, %v688, 0
        %924 = vmatprep.subr.bf16.mxu0 0
        %925 = vmatpush1.bf16.msra.mxu0 %v922
        %926 = vmatprep.subr.bf16.mxu0 0
        %927 = vmatpush1.bf16.msra.mxu0 0
        %928 = vmatprep.subr.bf16.mxu0 0
        %929 = vmatpush1.bf16.msra.mxu0 0
        %930 = vmatprep.subr.bf16.mxu0 0
        %931 = vmatpush1.bf16.msra.mxu0 0
        %932 = vmatprep.subr.bf16.mxu0 0
        %933 = vmatpush1.bf16.msra.mxu0 0
        %934 = vmatprep.subr.bf16.mxu0 0
        %935 = vmatpush1.bf16.msra.mxu0 0
        %936 = vmatprep.subr.bf16.mxu0 0
        %937 = vmatpush1.bf16.msra.mxu0 0
        %938 = vmatprep.subr.bf16.mxu0 0
        %939 = vmatpush1.bf16.msra.mxu0 0
        %940 = vmatprep.subr.bf16.mxu0 0
        %941 = vmatpush1.bf16.msra.mxu0 0
        %942 = vmatprep.subr.bf16.mxu0 0
        %943 = vmatpush1.bf16.msra.mxu0 0
        %944 = vmatprep.subr.bf16.mxu0 0
        %945 = vmatpush1.bf16.msra.mxu0 0
        %946 = vmatprep.subr.bf16.mxu0 0
        %947 = vmatpush1.bf16.msra.mxu0 0
        %948 = vmatprep.subr.bf16.mxu0 0
        %949 = vmatpush1.bf16.msra.mxu0 0
        %950 = vmatprep.subr.bf16.mxu0 0
        %951 = vmatpush1.bf16.msra.mxu0 0
        %952 = vmatprep.subr.bf16.mxu0 0
        %953 = vmatpush1.bf16.msra.mxu0 0
        %954 = vmatprep.subr.bf16.mxu0 0
        %955 = vmatpush1.bf16.msra.mxu0 0
        %956 = vmatprep.mubr.bf16.mxu0 0
        %957 = vmatmul.mubr.bf16.gmra.mrb[0].mxu0 %v919
        %v958 = vpop.f32.mrb[0].mxu0
        %v959 = vadd.f32 0.0, %v958
        %v960 = vpop.f32.mrb[0].mxu0
        %v961 = vpop.f32.mrb[0].mxu0
        %v962 = vpop.f32.mrb[0].mxu0
        %963 = vdwg.mxu0
        %v965 = vsel %vm692, %v915, 0
        %v968 = vsel %vm696, %v689, 0
        %970 = vmatprep.subr.bf16.mxu0 0
        %971 = vmatpush1.bf16.msra.mxu0 %v968
        %972 = vmatprep.subr.bf16.mxu0 0
        %973 = vmatpush1.bf16.msra.mxu0 0
        %974 = vmatprep.subr.bf16.mxu0 0
        %975 = vmatpush1.bf16.msra.mxu0 0
        %976 = vmatprep.subr.bf16.mxu0 0
        %977 = vmatpush1.bf16.msra.mxu0 0
        %978 = vmatprep.subr.bf16.mxu0 0
        %979 = vmatpush1.bf16.msra.mxu0 0
        %980 = vmatprep.subr.bf16.mxu0 0
        %981 = vmatpush1.bf16.msra.mxu0 0
        %982 = vmatprep.subr.bf16.mxu0 0
        %983 = vmatpush1.bf16.msra.mxu0 0
        %984 = vmatprep.subr.bf16.mxu0 0
        %985 = vmatpush1.bf16.msra.mxu0 0
        %986 = vmatprep.subr.bf16.mxu0 0
        %987 = vmatpush1.bf16.msra.mxu0 0
        %988 = vmatprep.subr.bf16.mxu0 0
        %989 = vmatpush1.bf16.msra.mxu0 0
        %990 = vmatprep.subr.bf16.mxu0 0
        %991 = vmatpush1.bf16.msra.mxu0 0
        %992 = vmatprep.subr.bf16.mxu0 0
        %993 = vmatpush1.bf16.msra.mxu0 0
        %994 = vmatprep.subr.bf16.mxu0 0
        %995 = vmatpush1.bf16.msra.mxu0 0
        %996 = vmatprep.subr.bf16.mxu0 0
        %997 = vmatpush1.bf16.msra.mxu0 0
        %998 = vmatprep.subr.bf16.mxu0 0
        %999 = vmatpush1.bf16.msra.mxu0 0
        %1000 = vmatprep.subr.bf16.mxu0 0
        %1001 = vmatpush1.bf16.msra.mxu0 0
        %1002 = vmatprep.mubr.bf16.mxu0 0
        %1003 = vmatmul.mubr.bf16.gmra.mrb[0].mxu0 %v965
        %v1004 = vpop.f32.mrb[0].mxu0
        %v1005 = vadd.f32 0.0, %v1004
        %v1006 = vpop.f32.mrb[0].mxu0
        %v1007 = vpop.f32.mrb[0].mxu0
        %v1008 = vpop.f32.mrb[0].mxu0
        %1009 = vdwg.mxu0
        %v1011 = vsel %vm692, %v916, 0
        %v1014 = vsel %vm696, %v690, 0
        %1016 = vmatprep.subr.bf16.mxu0 0
        %1017 = vmatpush1.bf16.msra.mxu0 %v1014
        %1018 = vmatprep.subr.bf16.mxu0 0
        %1019 = vmatpush1.bf16.msra.mxu0 0
        %1020 = vmatprep.subr.bf16.mxu0 0
        %1021 = vmatpush1.bf16.msra.mxu0 0
        %1022 = vmatprep.subr.bf16.mxu0 0
        %1023 = vmatpush1.bf16.msra.mxu0 0
        %1024 = vmatprep.subr.bf16.mxu0 0
        %1025 = vmatpush1.bf16.msra.mxu0 0
        %1026 = vmatprep.subr.bf16.mxu0 0
        %1027 = vmatpush1.bf16.msra.mxu0 0
        %1028 = vmatprep.subr.bf16.mxu0 0
        %1029 = vmatpush1.bf16.msra.mxu0 0
        %1030 = vmatprep.subr.bf16.mxu0 0
        %1031 = vmatpush1.bf16.msra.mxu0 0
        %1032 = vmatprep.subr.bf16.mxu0 0
        %1033 = vmatpush1.bf16.msra.mxu0 0
        %1034 = vmatprep.subr.bf16.mxu0 0
        %1035 = vmatpush1.bf16.msra.mxu0 0
        %1036 = vmatprep.subr.bf16.mxu0 0
        %1037 = vmatpush1.bf16.msra.mxu0 0
        %1038 = vmatprep.subr.bf16.mxu0 0
        %1039 = vmatpush1.bf16.msra.mxu0 0
        %1040 = vmatprep.subr.bf16.mxu0 0
        %1041 = vmatpush1.bf16.msra.mxu0 0
        %1042 = vmatprep.subr.bf16.mxu0 0
        %1043 = vmatpush1.bf16.msra.mxu0 0
        %1044 = vmatprep.subr.bf16.mxu0 0
        %1045 = vmatpush1.bf16.msra.mxu0 0
        %1046 = vmatprep.subr.bf16.mxu0 0
        %1047 = vmatpush1.bf16.msra.mxu0 0
        %1048 = vmatprep.mubr.bf16.mxu0 0
        %1049 = vmatmul.mubr.bf16.gmra.mrb[0].mxu0 %v1011
        %v1050 = vpop.f32.mrb[0].mxu0
        %v1051 = vadd.f32 0.0, %v1050
        %v1052 = vpop.f32.mrb[0].mxu0
        %v1053 = vpop.f32.mrb[0].mxu0
        %v1054 = vpop.f32.mrb[0].mxu0
        %1055 = vdwg.mxu0
        %v1057 = vsel %vm692, %v917, 0
        %v1060 = vsel %vm696, %v691, 0
        %1062 = vmatprep.subr.bf16.mxu0 0
        %1063 = vmatpush1.bf16.msra.mxu0 %v1060
        %1064 = vmatprep.subr.bf16.mxu0 0
        %1065 = vmatpush1.bf16.msra.mxu0 0
        %1066 = vmatprep.subr.bf16.mxu0 0
        %1067 = vmatpush1.bf16.msra.mxu0 0
        %1068 = vmatprep.subr.bf16.mxu0 0
        %1069 = vmatpush1.bf16.msra.mxu0 0
        %1070 = vmatprep.subr.bf16.mxu0 0
        %1071 = vmatpush1.bf16.msra.mxu0 0
        %1072 = vmatprep.subr.bf16.mxu0 0
        %1073 = vmatpush1.bf16.msra.mxu0 0
        %1074 = vmatprep.subr.bf16.mxu0 0
        %1075 = vmatpush1.bf16.msra.mxu0 0
        %1076 = vmatprep.subr.bf16.mxu0 0
        %1077 = vmatpush1.bf16.msra.mxu0 0
        %1078 = vmatprep.subr.bf16.mxu0 0
        %1079 = vmatpush1.bf16.msra.mxu0 0
        %1080 = vmatprep.subr.bf16.mxu0 0
        %1081 = vmatpush1.bf16.msra.mxu0 0
        %1082 = vmatprep.subr.bf16.mxu0 0
        %1083 = vmatpush1.bf16.msra.mxu0 0
        %1084 = vmatprep.subr.bf16.mxu0 0
        %1085 = vmatpush1.bf16.msra.mxu0 0
        %1086 = vmatprep.subr.bf16.mxu0 0
        %1087 = vmatpush1.bf16.msra.mxu0 0
        %1088 = vmatprep.subr.bf16.mxu0 0
        %1089 = vmatpush1.bf16.msra.mxu0 0
        %1090 = vmatprep.subr.bf16.mxu0 0
        %1091 = vmatpush1.bf16.msra.mxu0 0
        %1092 = vmatprep.subr.bf16.mxu0 0
        %1093 = vmatpush1.bf16.msra.mxu0 0
        %1094 = vmatprep.mubr.bf16.mxu0 0
        %1095 = vmatmul.mubr.bf16.gmra.mrb[0].mxu0 %v1057
        %v1096 = vpop.f32.mrb[0].mxu0
        %v1097 = vadd.f32 0.0, %v1096
        %v1098 = vpop.f32.mrb[0].mxu0
        %v1099 = vpop.f32.mrb[0].mxu0
        %v1100 = vpop.f32.mrb[0].mxu0
        %1101 = vdwg.mxu0
        %v1102 = vrcp.pop %v904
        %v1103 = vrcp.pop %v907
        %v1104 = vrcp.pop %v910
        %v1105 = vrcp.pop %v913
        %v1106 = vmul.f32 %v959, %v1102
        %v1107 = vmul.f32 %v1005, %v1103
        %v1108 = vmul.f32 %v1051, %v1104
        %v1109 = vmul.f32 %v1097, %v1105
        %v1110 = vpack.c.bf16 %v1106, %v1106
        %v1111 = vld [vmem:[%s3] sm:$0xf]
        %v1112 = vpack.c.bf16 %v1107, %v1107
        %s1113 = scalar_lea.vmem %s3, 4
        %v1114 = vld [vmem:[%s1113] sm:$0xf]
        %v1116 = vsel %vm692, %v1112, 0
        %v1119 = vsel %vm696, %v1114, 0
        %1121 = vmatprep.subr.bf16.mxu0 0
        %1122 = vmatpush1.bf16.msra.mxu0 %v1119
        %1123 = vmatprep.subr.bf16.mxu0 0
        %1124 = vmatpush1.bf16.msra.mxu0 0
        %1125 = vmatprep.subr.bf16.mxu0 0
        %1126 = vmatpush1.bf16.msra.mxu0 0
        %1127 = vmatprep.subr.bf16.mxu0 0
        %1128 = vmatpush1.bf16.msra.mxu0 0
        %1129 = vmatprep.subr.bf16.mxu0 0
        %1130 = vmatpush1.bf16.msra.mxu0 0
        %1131 = vmatprep.subr.bf16.mxu0 0
        %1132 = vmatpush1.bf16.msra.mxu0 0
        %1133 = vmatprep.subr.bf16.mxu0 0
        %1134 = vmatpush1.bf16.msra.mxu0 0
        %1135 = vmatprep.subr.bf16.mxu0 0
        %1136 = vmatpush1.bf16.msra.mxu0 0
        %1137 = vmatprep.subr.bf16.mxu0 0
        %1138 = vmatpush1.bf16.msra.mxu0 0
        %1139 = vmatprep.subr.bf16.mxu0 0
        %1140 = vmatpush1.bf16.msra.mxu0 0
        %1141 = vmatprep.subr.bf16.mxu0 0
        %1142 = vmatpush1.bf16.msra.mxu0 0
        %1143 = vmatprep.subr.bf16.mxu0 0
        %1144 = vmatpush1.bf16.msra.mxu0 0
        %1145 = vmatprep.subr.bf16.mxu0 0
        %1146 = vmatpush1.bf16.msra.mxu0 0
        %1147 = vmatprep.subr.bf16.mxu0 0
        %1148 = vmatpush1.bf16.msra.mxu0 0
        %1149 = vmatprep.subr.bf16.mxu0 0
        %1150 = vmatpush1.bf16.msra.mxu0 0
        %1151 = vmatprep.subr.bf16.mxu0 0
        %1152 = vmatpush1.bf16.msra.mxu0 0
        %1153 = vmatprep.mubr.bf16.mxu0 0
        %1154 = vmatmul.mubr.bf16.gmra.mrb[0].mxu0 %v1116
        %v1155 = vpop.f32.mrb[0].mxu0
        %v1156 = vadd.f32 0.0, %v1155
        %v1157 = vpop.f32.mrb[0].mxu0
        %v1158 = vpop.f32.mrb[0].mxu0
        %v1159 = vpop.f32.mrb[0].mxu0
        %1160 = vdwg.mxu0
        %v1162 = vsel %vm692, %v1110, 0
        %v1165 = vsel %vm696, %v1111, 0
        %1167 = vmatprep.subr.bf16.mxu0 0
        %1168 = vmatpush1.bf16.msra.mxu0 %v1165
        %1169 = vmatprep.subr.bf16.mxu0 0
        %1170 = vmatpush1.bf16.msra.mxu0 0
        %1171 = vmatprep.subr.bf16.mxu0 0
        %1172 = vmatpush1.bf16.msra.mxu0 0
        %1173 = vmatprep.subr.bf16.mxu0 0
        %1174 = vmatpush1.bf16.msra.mxu0 0
        %1175 = vmatprep.subr.bf16.mxu0 0
        %1176 = vmatpush1.bf16.msra.mxu0 0
        %1177 = vmatprep.subr.bf16.mxu0 0
        %1178 = vmatpush1.bf16.msra.mxu0 0
        %1179 = vmatprep.subr.bf16.mxu0 0
        %1180 = vmatpush1.bf16.msra.mxu0 0
        %1181 = vmatprep.subr.bf16.mxu0 0
        %1182 = vmatpush1.bf16.msra.mxu0 0
        %1183 = vmatprep.subr.bf16.mxu0 0
        %1184 = vmatpush1.bf16.msra.mxu0 0
        %1185 = vmatprep.subr.bf16.mxu0 0
        %1186 = vmatpush1.bf16.msra.mxu0 0
        %1187 = vmatprep.subr.bf16.mxu0 0
        %1188 = vmatpush1.bf16.msra.mxu0 0
        %1189 = vmatprep.subr.bf16.mxu0 0
        %1190 = vmatpush1.bf16.msra.mxu0 0
        %1191 = vmatprep.subr.bf16.mxu0 0
        %1192 = vmatpush1.bf16.msra.mxu0 0
        %1193 = vmatprep.subr.bf16.mxu0 0
        %1194 = vmatpush1.bf16.msra.mxu0 0
        %1195 = vmatprep.subr.bf16.mxu0 0
        %1196 = vmatpush1.bf16.msra.mxu0 0
        %1197 = vmatprep.subr.bf16.mxu0 0
        %1198 = vmatpush1.bf16.msra.mxu0 0
        %1199 = vmatprep.mubr.bf16.mxu0 0
        %1200 = vmatmul.mubr.bf16.gmra.mrb[0].mxu0 %v1162
        %v1201 = vpop.f32.mrb[0].mxu0
        %v1202 = vadd.f32 %v1156, %v1201
        %v1203 = vpop.f32.mrb[0].mxu0
        %v1204 = vpop.f32.mrb[0].mxu0
        %v1205 = vpop.f32.mrb[0].mxu0
        %1206 = vdwg.mxu0
        %v1207 = vpack.c.bf16 %v1108, %v1108
        %s1208 = scalar_lea.vmem %s3, 8
        %v1209 = vld [vmem:[%s1208] sm:$0xf]
        %v1211 = vsel %vm692, %v1207, 0
        %v1214 = vsel %vm696, %v1209, 0
        %1216 = vmatprep.subr.bf16.mxu0 0
        %1217 = vmatpush1.bf16.msra.mxu0 %v1214
        %1218 = vmatprep.subr.bf16.mxu0 0
        %1219 = vmatpush1.bf16.msra.mxu0 0
        %1220 = vmatprep.subr.bf16.mxu0 0
        %1221 = vmatpush1.bf16.msra.mxu0 0
        %1222 = vmatprep.subr.bf16.mxu0 0
        %1223 = vmatpush1.bf16.msra.mxu0 0
        %1224 = vmatprep.subr.bf16.mxu0 0
        %1225 = vmatpush1.bf16.msra.mxu0 0
        %1226 = vmatprep.subr.bf16.mxu0 0
        %1227 = vmatpush1.bf16.msra.mxu0 0
        %1228 = vmatprep.subr.bf16.mxu0 0
        %1229 = vmatpush1.bf16.msra.mxu0 0
        %1230 = vmatprep.subr.bf16.mxu0 0
        %1231 = vmatpush1.bf16.msra.mxu0 0
        %1232 = vmatprep.subr.bf16.mxu0 0
        %1233 = vmatpush1.bf16.msra.mxu0 0
        %1234 = vmatprep.subr.bf16.mxu0 0
        %1235 = vmatpush1.bf16.msra.mxu0 0
        %1236 = vmatprep.subr.bf16.mxu0 0
        %1237 = vmatpush1.bf16.msra.mxu0 0
        %1238 = vmatprep.subr.bf16.mxu0 0
        %1239 = vmatpush1.bf16.msra.mxu0 0
        %1240 = vmatprep.subr.bf16.mxu0 0
        %1241 = vmatpush1.bf16.msra.mxu0 0
        %1242 = vmatprep.subr.bf16.mxu0 0
        %1243 = vmatpush1.bf16.msra.mxu0 0
        %1244 = vmatprep.subr.bf16.mxu0 0
        %1245 = vmatpush1.bf16.msra.mxu0 0
        %1246 = vmatprep.subr.bf16.mxu0 0
        %1247 = vmatpush1.bf16.msra.mxu0 0
        %1248 = vmatprep.mubr.bf16.mxu0 0
        %1249 = vmatmul.mubr.bf16.gmra.mrb[0].mxu0 %v1211
        %v1250 = vpop.f32.mrb[0].mxu0
        %v1251 = vadd.f32 0.0, %v1250
        %v1252 = vpop.f32.mrb[0].mxu0
        %v1253 = vpop.f32.mrb[0].mxu0
        %v1254 = vpop.f32.mrb[0].mxu0
        %1255 = vdwg.mxu0
        %v1256 = vadd.f32 %v1202, %v1251
        %v1257 = vpack.c.bf16 %v1109, %v1109
        %s1258 = scalar_lea.vmem %s3, 12
        %v1259 = vld [vmem:[%s1258] sm:$0xf]
        %v1261 = vsel %vm692, %v1257, 0
        %v1264 = vsel %vm696, %v1259, 0
        %1266 = vmatprep.subr.bf16.mxu0 0
        %1267 = vmatpush1.bf16.msra.mxu0 %v1264
        %1268 = vmatprep.subr.bf16.mxu0 0
        %1269 = vmatpush1.bf16.msra.mxu0 0
        %1270 = vmatprep.subr.bf16.mxu0 0
        %1271 = vmatpush1.bf16.msra.mxu0 0
        %1272 = vmatprep.subr.bf16.mxu0 0
        %1273 = vmatpush1.bf16.msra.mxu0 0
        %1274 = vmatprep.subr.bf16.mxu0 0
        %1275 = vmatpush1.bf16.msra.mxu0 0
        %1276 = vmatprep.subr.bf16.mxu0 0
        %1277 = vmatpush1.bf16.msra.mxu0 0
        %1278 = vmatprep.subr.bf16.mxu0 0
        %1279 = vmatpush1.bf16.msra.mxu0 0
        %1280 = vmatprep.subr.bf16.mxu0 0
        %1281 = vmatpush1.bf16.msra.mxu0 0
        %1282 = vmatprep.subr.bf16.mxu0 0
        %1283 = vmatpush1.bf16.msra.mxu0 0
        %1284 = vmatprep.subr.bf16.mxu0 0
        %1285 = vmatpush1.bf16.msra.mxu0 0
        %1286 = vmatprep.subr.bf16.mxu0 0
        %1287 = vmatpush1.bf16.msra.mxu0 0
        %1288 = vmatprep.subr.bf16.mxu0 0
        %1289 = vmatpush1.bf16.msra.mxu0 0
        %1290 = vmatprep.subr.bf16.mxu0 0
        %1291 = vmatpush1.bf16.msra.mxu0 0
        %1292 = vmatprep.subr.bf16.mxu0 0
        %1293 = vmatpush1.bf16.msra.mxu0 0
        %1294 = vmatprep.subr.bf16.mxu0 0
        %1295 = vmatpush1.bf16.msra.mxu0 0
        %1296 = vmatprep.subr.bf16.mxu0 0
        %1297 = vmatpush1.bf16.msra.mxu0 0
        %1298 = vmatprep.mubr.bf16.mxu0 0
        %1299 = vmatmul.mubr.bf16.gmra.mrb[0].mxu0 %v1261
        %v1300 = vpop.f32.mrb[0].mxu0
        %v1301 = vadd.f32 0.0, %v1300
        %v1302 = vpop.f32.mrb[0].mxu0
        %v1303 = vpop.f32.mrb[0].mxu0
        %v1304 = vpop.f32.mrb[0].mxu0
        %1305 = vdwg.mxu0
        %v1306 = vadd.f32 %v1256, %v1301
        %v1307 = vadd.f32 %v677, %v1306
        %v1308 = vld [vmem:[%s4] sm:$0x1]
        %v1310 = vlaneseq
        %v1311 = vshrl.u32 %v1310, 7
        %v1312 = vsub.s32 0, %v1311
        %v1313 = vrot.slane %v1308, %v1312
        %v1315 = vadd.f32 %v1307, %v1313
        %v1316 = vld [vmem:[%s5] sm:$0x1]
        %v1317 = vld [vmem:[%s6] sm:$0x1]
        %vm1318 = vcmask 261120
        %v1319 = vsel %vm1318, %v1315, 0.0
        %1320 = vadd.xlane.f32.xlu0 %v1319
        %v1321 = vpop.xlane.xlu0 %1320
        %v1322 = vrcp.pop 32.0
        %v1323 = vmul.f32 %v1321, %v1322
        %v1324 = vsub.f32 %v1315, %v1323
        %v1325 = vmul.f32 %v1324, %v1324
        %v1326 = vsel %vm1318, %v1325, 0.0
        %1327 = vadd.xlane.f32.xlu0 %v1326
        %v1328 = vpop.xlane.xlu0 %1327
        %v1329 = vmul.f32 %v1328, %v1322
        %v1330 = vadd.f32 %v1329, 1e-05
        %v1331 = vrsqrt.pop %v1330
        %v1332 = vmul.f32 %v1324, %v1331
        %v1334 = vlaneseq
        %v1335 = vshrl.u32 %v1334, 7
        %v1336 = vsub.s32 0, %v1335
        %v1337 = vrot.slane %v1316, %v1336
        %v1339 = vmul.f32 %v1332, %v1337
        %v1341 = vlaneseq
        %v1342 = vshrl.u32 %v1341, 7
        %v1343 = vsub.s32 0, %v1342
        %v1344 = vrot.slane %v1317, %v1343
        %v1346 = vadd.f32 %v1339, %v1344
        %v1347 = vpack.c.bf16 %v1346, %v1346
        %v1348 = vld [vmem:[%s7] sm:$0xf]
        %v1349 = vld [vmem:[%s7 + $0x4] sm:$0xf]
        %v1350 = vld [vmem:[%s7 + $0x8] sm:$0xf]
        %v1351 = vld [vmem:[%s7 + $0xc] sm:$0xf]
        %v1352 = vld [vmem:[%s8] sm:$0x1]
        %v1354 = vlaneseq
        %v1355 = vshrl.u32 %v1354, 7
        %v1356 = vsub.s32 0, %v1355
        %v1357 = vrot.slane %v1352, %v1356
        %v1363 = vunpack.c.l.b16 %v1348
        %v1364 = vunpack.c.l.b16 %v1349
        %v1365 = vunpack.c.l.b16 %v1350
        %v1366 = vunpack.c.l.b16 %v1351
        %v1367 = vpack.c.b16 %v1364, %v1363
        %v1368 = vpack.c.b16 %v1366, %v1365
        %v1372 = vsel %vm1318, %v1347, 0
        %1374 = vmatprep.subr.bf16.mxu0 0
        %1375 = vmatpush1.bf16.msra.mxu0 %v1367
        %1376 = vmatprep.subr.bf16.mxu0 0
        %1377 = vmatpush1.bf16.msra.mxu0 %v1368
        %1378 = vmatprep.subr.bf16.mxu0 0
        %1379 = vmatpush1.bf16.msra.mxu0 0
        %1380 = vmatprep.subr.bf16.mxu0 0
        %1381 = vmatpush1.bf16.msra.mxu0 0
        %1382 = vmatprep.subr.bf16.mxu0 0
        %1383 = vmatpush1.bf16.msra.mxu0 0
        %1384 = vmatprep.subr.bf16.mxu0 0
        %1385 = vmatpush1.bf16.msra.mxu0 0
        %1386 = vmatprep.subr.bf16.mxu0 0
        %1387 = vmatpush1.bf16.msra.mxu0 0
        %1388 = vmatprep.subr.bf16.mxu0 0
        %1389 = vmatpush1.bf16.msra.mxu0 0
        %1390 = vmatprep.subr.bf16.mxu0 0
        %1391 = vmatpush1.bf16.msra.mxu0 0
        %1392 = vmatprep.subr.bf16.mxu0 0
        %1393 = vmatpush1.bf16.msra.mxu0 0
        %1394 = vmatprep.subr.bf16.mxu0 0
        %1395 = vmatpush1.bf16.msra.mxu0 0
        %1396 = vmatprep.subr.bf16.mxu0 0
        %1397 = vmatpush1.bf16.msra.mxu0 0
        %1398 = vmatprep.subr.bf16.mxu0 0
        %1399 = vmatpush1.bf16.msra.mxu0 0
        %1400 = vmatprep.subr.bf16.mxu0 0
        %1401 = vmatpush1.bf16.msra.mxu0 0
        %1402 = vmatprep.subr.bf16.mxu0 0
        %1403 = vmatpush1.bf16.msra.mxu0 0
        %1404 = vmatprep.subr.bf16.mxu0 0
        %1405 = vmatpush1.bf16.msra.mxu0 0
        %1406 = vmatprep.mubr.bf16.mxu0 0
        %1407 = vmatmul.mubr.bf16.gmra.mrb[0].mxu0 %v1372
        %v1408 = vpop.f32.mrb[0].mxu0
        %v1409 = vadd.f32 %v1357, %v1408
        %v1410 = vpop.f32.mrb[0].mxu0
        %v1411 = vpop.f32.mrb[0].mxu0
        %v1412 = vpop.f32.mrb[0].mxu0
        %1413 = vdwg.mxu0
        %v1414 = vmax.f32 %v1409, 0.0
        %v1415 = vpack.c.bf16 %v1414, %v1414
        %v1416 = vld [vmem:[%s9] sm:$0xf]
        %v1417 = vld [vmem:[%s9 + $0x4] sm:$0xf]
        %v1418 = vld [vmem:[%s9 + $0x8] sm:$0xf]
        %v1419 = vld [vmem:[%s9 + $0xc] sm:$0xf]
        %v1420 = vld [vmem:[%s9 + $0x10] sm:$0xf]
        %v1421 = vld [vmem:[%s9 + $0x14] sm:$0xf]
        %v1422 = vld [vmem:[%s9 + $0x18] sm:$0xf]
        %v1423 = vld [vmem:[%s9 + $0x1c] sm:$0xf]
        %v1424 = vld [vmem:[%s10] sm:$0x1]
        %v1426 = vlaneseq
        %v1427 = vshrl.u32 %v1426, 7
        %v1428 = vsub.s32 0, %v1427
        %v1429 = vrot.slane %v1424, %v1428
        %v1439 = vunpack.c.l.b16 %v1416
        %v1440 = vunpack.c.l.b16 %v1417
        %v1441 = vunpack.c.l.b16 %v1418
        %v1442 = vunpack.c.l.b16 %v1419
        %v1443 = vunpack.c.l.b16 %v1420
        %v1444 = vunpack.c.l.b16 %v1421
        %v1445 = vunpack.c.l.b16 %v1422
        %v1446 = vunpack.c.l.b16 %v1423
        %v1447 = vpack.c.b16 %v1440, %v1439
        %v1448 = vpack.c.b16 %v1442, %v1441
        %v1449 = vpack.c.b16 %v1444, %v1443
        %v1450 = vpack.c.b16 %v1446, %v1445
        %vm1455 = vcmask 523264
        %v1457 = vsel %vm1455, %v1415, 0
        %1459 = vmatprep.subr.bf16.mxu0 0
        %1460 = vmatpush1.bf16.msra.mxu0 %v1447
        %1461 = vmatprep.subr.bf16.mxu0 0
        %1462 = vmatpush1.bf16.msra.mxu0 %v1448
        %1463 = vmatprep.subr.bf16.mxu0 0
        %1464 = vmatpush1.bf16.msra.mxu0 %v1449
        %1465 = vmatprep.subr.bf16.mxu0 0
        %1466 = vmatpush1.bf16.msra.mxu0 %v1450
        %1467 = vmatprep.subr.bf16.mxu0 0
        %1468 = vmatpush1.bf16.msra.mxu0 0
        %1469 = vmatprep.subr.bf16.mxu0 0
        %1470 = vmatpush1.bf16.msra.mxu0 0
        %1471 = vmatprep.subr.bf16.mxu0 0
        %1472 = vmatpush1.bf16.msra.mxu0 0
        %1473 = vmatprep.subr.bf16.mxu0 0
        %1474 = vmatpush1.bf16.msra.mxu0 0
        %1475 = vmatprep.subr.bf16.mxu0 0
        %1476 = vmatpush1.bf16.msra.mxu0 0
        %1477 = vmatprep.subr.bf16.mxu0 0
        %1478 = vmatpush1.bf16.msra.mxu0 0
        %1479 = vmatprep.subr.bf16.mxu0 0
        %1480 = vmatpush1.bf16.msra.mxu0 0
        %1481 = vmatprep.subr.bf16.mxu0 0
        %1482 = vmatpush1.bf16.msra.mxu0 0
        %1483 = vmatprep.subr.bf16.mxu0 0
        %1484 = vmatpush1.bf16.msra.mxu0 0
        %1485 = vmatprep.subr.bf16.mxu0 0
        %1486 = vmatpush1.bf16.msra.mxu0 0
        %1487 = vmatprep.subr.bf16.mxu0 0
        %1488 = vmatpush1.bf16.msra.mxu0 0
        %1489 = vmatprep.subr.bf16.mxu0 0
        %1490 = vmatpush1.bf16.msra.mxu0 0
        %1491 = vmatprep.mubr.bf16.mxu0 0
        %1492 = vmatmul.mubr.bf16.gmra.mrb[0].mxu0 %v1457
        %v1493 = vpop.f32.mrb[0].mxu0
        %v1494 = vadd.f32 %v1429, %v1493
        %v1495 = vpop.f32.mrb[0].mxu0
        %v1496 = vpop.f32.mrb[0].mxu0
        %v1497 = vpop.f32.mrb[0].mxu0
        %1498 = vdwg.mxu0
        %v1499 = vadd.f32 %v1346, %v1494
        %v1500 = vld [vmem:[%s11] sm:$0x1]
        %v1501 = vld [vmem:[%s12] sm:$0x1]
        %v1502 = vsel %vm1318, %v1499, 0.0
        %1503 = vadd.xlane.f32.xlu0 %v1502
        %v1504 = vpop.xlane.xlu0 %1503
        %v1505 = vmul.f32 %v1504, %v1322
        %v1506 = vsub.f32 %v1499, %v1505
        %v1507 = vmul.f32 %v1506, %v1506
        %v1508 = vsel %vm1318, %v1507, 0.0
        %1509 = vadd.xlane.f32.xlu0 %v1508
        %v1510 = vpop.xlane.xlu0 %1509
        %v1511 = vmul.f32 %v1510, %v1322
        %v1512 = vadd.f32 %v1511, 1e-05
        %v1513 = vrsqrt.pop %v1512
        %v1514 = vmul.f32 %v1506, %v1513
        %v1516 = vlaneseq
        %v1517 = vshrl.u32 %v1516, 7
        %v1518 = vsub.s32 0, %v1517
        %v1519 = vrot.slane %v1500, %v1518
        %v1521 = vmul.f32 %v1514, %v1519
        %v1523 = vlaneseq
        %v1524 = vshrl.u32 %v1523, 7
        %v1525 = vsub.s32 0, %v1524
        %v1526 = vrot.slane %v1501, %v1525
        %v1528 = vadd.f32 %v1521, %v1526
        %1529 = vst.msk [vmem:[%s469] sm:$0xff] %vm1318, %v1528
        %s1530 = sand.u32 %s330, 1
        %s1531 = scalar_lea.sflag [#allocation7], %s1530
        %s1532 = sand.u32 %s330, 1
        %s1533 = smul.addr %s1532, 8
        %s1534 = scalar_lea.vmem [#allocation8], %s1533
        // Predicated region
        $region81: #{tpu_custom_call.1} parent=71 // pred_check
          %p1535 = pneg %p340
        $region82: #{tpu_custom_call.1} parent=71 // pred_check_branch
          %1537 = sbr.rel (%p1535) target = $region84
        $region83: #{tpu_custom_call.1} parent=71 // pred_region
          %s1539 = ssub.s32 128, 128
          %1540 = vsyncadd %s1531, %s1539
          %s1541 = sadd.s32 %s35, %s34
          %s1542 = smul.addr %s1541, 128
          %s1543 = scalar_lea.hbm %s13, %s1542
          %s1545 = sshll.u32 %s1534, 4
          %s1546 = int_to_ptr.vmem [resolvable:$true] %s1545
          %1548 = dma.vmem_to_hbm [thread:$0]  %s1546, 128, %s1543, %s1531
        $region84: #{tpu_custom_call.1} parent=71 // pred_fallthru
          _
      $region72: #{tpu_custom_call.1} parent=5 // pred_fallthru
        _
      %p1549 = scmp.le.s32.totalorder 2, %s25
      // Predicated region
      $region85: #{tpu_custom_call.1} parent=5 // pred_check
        %p1550 = pneg %p1549
      $region86: #{tpu_custom_call.1} parent=5 // pred_check_branch
        %1552 = sbr.rel (%p1550) target = $region88
      $region87: #{tpu_custom_call.1} parent=5 // pred_region
        %s1553 = ssub.s32 %s25, 2
        // Predicated region
        $region89: #{tpu_custom_call.1} parent=87 // pred_check
          %p1554 = pneg %p346
        $region90: #{tpu_custom_call.1} parent=87 // pred_check_branch
          %1556 = sbr.rel (%p1554) target = $region92
        $region91: #{tpu_custom_call.1} parent=87 // pred_region
          %s1557 = sand.u32 %s331, 1
          %s1558 = scalar_lea.sflag [#allocation7], %s1557
          %s1559 = sand.u32 %s331, 1
          %s1560 = smul.addr %s1559, 8
          %s1561 = scalar_lea.vmem [#allocation8], %s1560
          %1562 = dma.done %s1558, 128
        $region92: #{tpu_custom_call.1} parent=87 // pred_fallthru
          _
      $region88: #{tpu_custom_call.1} parent=5 // pred_fallthru
        _
    $region6: #{tpu_custom_call.1} parent=1 // loop_footer
      %s29 = sadd.s32 1, %s25
    $region7: #{tpu_custom_call.1} parent=1 // loop_footer_branch
      %24 = sbr.rel target = $region3
    $region8: #{tpu_custom_call.1} parent=1 // loop_exit
      _
    %1563 = vsyncpa [#allocation6], 1
    %s1564 = scalar_lea.sflag [#allocation6], 1
    %1565 = vsyncpa %s1564, 1
    %1566 = vsyncpa [#allocation7], 1
    %s1567 = scalar_lea.sflag [#allocation7], 1
    %1568 = vsyncpa %s1567, 1

</llo_original>
